<compile_context>
chip_gen: v6e
topology: v6e:2x2x1
jax: 0.10.0
libtpu: 0.0.40
codegen_flags: <defaults>
</compile_context>

<pallas_src>
import functools
import math

import jax
import jax.numpy as jnp
from jax import lax
from jax.experimental import pallas as pl
from jax.experimental.pallas import tpu as pltpu


def _mha_kernel(n_head, d_k, d_v, dout,
                q_ref, k_ref, v_ref,
                wq_ref, wk_ref, wv_ref, w1_ref, w2_ref, vec_ref,
                out_ref, res_ref, attn_ref):
    hk = n_head * d_k
    hv = n_head * d_v
    bf = jnp.bfloat16

    # ---- unpack the packed small parameters (f32, lane-0 / sublane slices) ----
    vec = vec_ref[...]                                     # (11, P)
    b_q, b_k, b_v = vec[0:1, :hk], vec[1:2, :hk], vec[2:3, :hv]
    g_q, be_q = vec[3:4, :hk], vec[4:5, :hk]
    g_k, be_k = vec[5:6, :hk], vec[6:7, :hk]
    g_v, be_v = vec[7:8, :hv], vec[8:9, :hv]
    b_fc1, b_fc2 = vec[9:10, :hv], vec[10:11, :dout]

    # ---- in-kernel bf16 cast (inputs are read from HBM as f32) ----
    q_x = q_ref[...].astype(bf)                            # (TQ, d_model)
    k_x = k_ref[...].astype(bf)                            # (Lk, d_model)
    v_x = v_ref[...].astype(bf)                            # (Lk, d_model)

    def proj(x, w_ref, b):
        return jnp.dot(x, w_ref[...], preferred_element_type=jnp.float32) + b

    qp = proj(q_x, wq_ref, b_q)                            # (TQ, hk) f32
    kp = proj(k_x, wk_ref, b_k)                            # (Lk, hk)
    vp = proj(v_x, wv_ref, b_v)                            # (Lk, hv)

    res_ref[...] = qp                                      # residual = pre-LN projection

    def layer_norm(x, g, b):
        mu = jnp.mean(x, axis=-1, keepdims=True)
        var = jnp.mean(jnp.square(x - mu), axis=-1, keepdims=True)
        return (x - mu) * lax.rsqrt(var + 1e-6) * g + b

    qn = layer_norm(qp, g_q, be_q)
    kn = layer_norm(kp, g_k, be_k)
    vn = layer_norm(vp, g_v, be_v)

    scale = 1.0 / (d_k ** 0.5)

    def softmax(s):
        m = jnp.max(s, axis=-1, keepdims=True)
        e = jnp.exp(s - m)
        return e * pl.reciprocal(jnp.sum(e, axis=-1, keepdims=True), approx=True)

    # TODO(synk): optional attention mask + dropout not implemented (the forward
    # path under test uses mask=None and dropout p=0.0).
    # TODO(synk): the module returns the full attention-probability matrix, so
    # a (TQ, Lk) score tile is materialized per step; if that output were made
    # optional, the Lk axis could also be tiled with an online (flash) softmax.
    if n_head == 1:
        qb = (qn * scale).astype(bf)                       # (TQ, hk)
        kb = kn.astype(bf)                                 # (Lk, hk)
        vb = vn.astype(bf)                                 # (Lk, hv)
        s = lax.dot_general(qb, kb, (((1,), (1,)), ((), ())),
                            preferred_element_type=jnp.float32)   # (TQ, Lk)
        p = softmax(s)
        attn_ref[...] = p.reshape((1,) + p.shape)
        o = jnp.dot(p.astype(bf), vb,
                    preferred_element_type=jnp.float32)           # (TQ, hv)
    else:
        # Generic path (PyTorch reference is only shape-valid for n_head == 1):
        # heads folded into a single batched einsum, LN replicated over the
        # flat n_head*d_k dim exactly as the PyTorch module does.
        TQ, Lk = qn.shape[0], kn.shape[0]
        qh = (qn * scale).reshape(TQ, n_head, d_k).astype(bf)
        kh = kn.reshape(Lk, n_head, d_k).astype(bf)
        vh = vn.reshape(Lk, n_head, d_v).astype(bf)
        s = jnp.einsum('qhd,khd->hqk', qh, kh,
                       preferred_element_type=jnp.float32)        # (H, TQ, Lk)
        p = softmax(s)
        attn_ref[...] = p
        o = jnp.einsum('hqk,khd->qhd', p.astype(bf), vh,
                       preferred_element_type=jnp.float32).reshape(TQ, hv)

    # ---- output MLP: Linear -> ReLU -> Linear ----
    h1 = jnp.maximum(
        jnp.dot(o.astype(bf), w1_ref[...],
                preferred_element_type=jnp.float32) + b_fc1, 0.0)
    out_ref[...] = jnp.dot(h1.astype(bf), w2_ref[...],
                           preferred_element_type=jnp.float32) + b_fc2


def pack_params(params):
    """One-time parameter packing (hoisted out of the per-call forward)."""
    (wq, bq, wk, bk, wv, bv,
     gq, bgq, gk, bgk, gv, bgv,
     w1, b1, w2, b2) = params
    hk, hv, dout = wq.shape[1], wv.shape[1], w2.shape[1]
    P = max(hk, hv, dout)

    def _row(x):
        x = x.reshape(-1).astype(jnp.float32)
        return jnp.pad(x, (0, P - x.shape[0]))

    vec_pack = jnp.stack(
        [_row(x) for x in (bq, bk, bv, gq, bgq, gk, bgk, gv, bgv, b1, b2)], axis=0)
    bfc = jnp.bfloat16
    return dict(w_q=wq.astype(bfc), w_k=wk.astype(bfc), w_v=wv.astype(bfc),
                w_fc1=w1.astype(bfc), w_fc2=w2.astype(bfc), vec=vec_pack)


@functools.partial(jax.jit, static_argnames=("n_head", "d_k", "d_v", "dout", "q_tile"))
def multi_head_attention(packed, q, k, v, *, n_head, d_k, d_v, dout, q_tile=None):
    B, Lq, d_model = q.shape
    Lk = k.shape[1]
    assert v.shape[1] == Lk, "attention requires len_k == len_v"
    hk, hv = n_head * d_k, n_head * d_v
    P = packed["vec"].shape[1]

    if q_tile is None:
        q_tile = Lq if Lq <= 256 else 256
    TQ = q_tile
    assert Lq % TQ == 0, "Lq must be divisible by the q-row tile"
    n_q_tiles = Lq // TQ

    grid = (B, n_q_tiles)
    in_specs = [
        pl.BlockSpec((None, TQ, d_model), lambda b, i: (b, i, 0)),   # q tile
        pl.BlockSpec((None, Lk, d_model), lambda b, i: (b, 0, 0)),   # k (per batch)
        pl.BlockSpec((None, Lk, d_model), lambda b, i: (b, 0, 0)),   # v (per batch)
        pl.BlockSpec((d_model, hk), lambda b, i: (0, 0)),            # Wq (resident)
        pl.BlockSpec((d_model, hk), lambda b, i: (0, 0)),            # Wk
        pl.BlockSpec((d_model, hv), lambda b, i: (0, 0)),            # Wv
        pl.BlockSpec((hv, hv), lambda b, i: (0, 0)),                 # fc1
        pl.BlockSpec((hv, dout), lambda b, i: (0, 0)),               # fc2
        pl.BlockSpec((11, P), lambda b, i: (0, 0)),                  # packed vectors
    ]
    out_specs = [
        pl.BlockSpec((None, TQ, dout), lambda b, i: (b, i, 0)),
        pl.BlockSpec((None, TQ, hk), lambda b, i: (b, i, 0)),
        pl.BlockSpec((None, n_head, TQ, Lk), lambda b, i: (b, 0, i, 0)),
    ]
    out_shapes = [
        jax.ShapeDtypeStruct((B, Lq, dout), jnp.float32),
        jax.ShapeDtypeStruct((B, Lq, hk), jnp.float32),
        jax.ShapeDtypeStruct((B, n_head, Lq, Lk), jnp.float32),
    ]

    # ---- advisory cost estimate (per full call) ----
    flops = 2 * B * (Lq * d_model * hk + Lk * d_model * hk + Lk * d_model * hv
                     + n_head * Lq * Lk * (d_k + d_v)
                     + Lq * (hv * hv + hv * dout))
    transcendentals = B * n_head * Lq * Lk
    bytes_accessed = (4 * (q.size + k.size + v.size)
                      + 2 * (d_model * (2 * hk + hv) + hv * hv + hv * dout)
                      + 4 * 11 * P
                      + 4 * B * (Lq * dout + Lq * hk + n_head * Lq * Lk))
    cost = pl.CostEstimate(flops=flops, transcendentals=transcendentals,
                           bytes_accessed=bytes_accessed)

    # ---- explicit VMEM budget (double-buffered I/O tiles + intermediates) ----
    lane = lambda n: max(n, 128)  # account for lane padding of narrow dims
    in_step = (TQ * d_model * 4 + 2 * Lk * d_model * 4
               + (d_model * (2 * lane(hk) + lane(hv))
                  + lane(hv) * lane(hv) + lane(hv) * lane(dout)) * 2
               + 11 * lane(P) * 4)
    out_step = (TQ * lane(dout) + TQ * lane(hk) + n_head * TQ * lane(Lk)) * 4
    inter = (3 * TQ * lane(hk) + 2 * Lk * lane(hk) + 2 * Lk * lane(hv)
             + 2 * n_head * TQ * lane(Lk) + 2 * TQ * lane(hv)) * 4
    vmem_limit = int(min(2 * (in_step + out_step) + inter + (8 << 20), 48 << 20))

    kernel = functools.partial(_mha_kernel, n_head, d_k, d_v, dout)
    out, res, attn = pl.pallas_call(
        kernel,
        grid=grid,
        in_specs=in_specs,
        out_specs=out_specs,
        out_shape=out_shapes,
        compiler_params=pltpu.CompilerParams(
            dimension_semantics=("parallel", "parallel"),
            vmem_limit_bytes=vmem_limit),
        cost_estimate=cost,
    )(q, k, v,
      packed["w_q"], packed["w_k"], packed["w_v"],
      packed["w_fc1"], packed["w_fc2"], packed["vec"])

    residual = res.reshape(B, Lq, n_head, d_k)
    # Mirror the PyTorch forward's attn.squeeze() (squeezes ALL unit dims).
    return out, residual, jnp.squeeze(attn)


def _reference(params, q, k, v, *, n_head, d_k, d_v):
    """Pure-f32 JAX reference mirroring the PyTorch forward (n_head == 1 case)."""
    (wq, bq, wk, bk, wv, bv,
     gq, bgq, gk, bgk, gv, bgv,
     w1, b1, w2, b2) = params

    def ln(x, g, b):
        mu = jnp.mean(x, -1, keepdims=True)
        var = jnp.mean((x - mu) ** 2, -1, keepdims=True)
        return (x - mu) / jnp.sqrt(var + 1e-6) * g + b

    qp = q @ wq + bq
    kp = k @ wk + bk
    vp = v @ wv + bv
    B, Lq, _ = q.shape
    Lk = k.shape[1]
    residual = qp.reshape(B, Lq, n_head, d_k)
    qn, kn, vn = ln(qp, gq, bgq), ln(kp, gk, bgk), ln(vp, gv, bgv)
    qh = qn.reshape(B, Lq, n_head, d_k).transpose(0, 2, 1, 3)
    kh = kn.reshape(B, Lk, n_head, d_k).transpose(0, 2, 1, 3)
    vh = vn.reshape(B, Lk, n_head, d_v).transpose(0, 2, 1, 3)
    s = jnp.einsum('bhqd,bhkd->bhqk', qh / (d_k ** 0.5), kh)
    p = jax.nn.softmax(s, axis=-1)
    o = jnp.einsum('bhqk,bhkd->bhqd', p, vh).transpose(0, 2, 1, 3).reshape(B, Lq, -1)
    out = jnp.maximum(o @ w1 + b1, 0.0) @ w2 + b2
    return out, residual, jnp.squeeze(p)


def _reference_matched(params, q, k, v, *, d_k):
    """Mirrors the kernel's precision policy (bf16 matmul operands, f32 accumulate)."""
    (wq, bq, wk, bk, wv, bv,
     gq, bgq, gk, bgk, gv, bgv,
     w1, b1, w2, b2) = params
    bf = lambda x: x.astype(jnp.bfloat16)
    f32 = jnp.float32
    dot = lambda a, b: jnp.dot(bf(a), bf(b), preferred_element_type=f32)

    def ln(x, g, b):
        mu = jnp.mean(x, -1, keepdims=True)
        var = jnp.mean((x - mu) ** 2, -1, keepdims=True)
        return (x - mu) / jnp.sqrt(var + 1e-6) * g + b

    qp = dot(q, wq) + bq
    kp = dot(k, wk) + bk
    vp = dot(v, wv) + bv
    qn, kn, vn = ln(qp, gq, bgq), ln(kp, gk, bgk), ln(vp, gv, bgv)
    s = jnp.einsum('bqd,bkd->bqk', bf(qn / (d_k ** 0.5)), bf(kn),
                   preferred_element_type=f32)
    p = jax.nn.softmax(s, axis=-1)
    o = jnp.einsum('bqk,bkd->bqd', bf(p), bf(vn), preferred_element_type=f32)
    h1 = jnp.maximum(dot(o, w1) + b1, 0.0)
    out = dot(h1, w2) + b2
    return out, qp, p


if __name__ == "__main__":
    # Module config (the reference is only shape-valid with n_head = 1).
    n_head, d_model, d_k, d_v, dout = 1, 32, 16, 16, 32
    B, L = 2, 8
    hk, hv = n_head * d_k, n_head * d_v

    key = jax.random.PRNGKey(0)
    keys = jax.random.split(key, 16)

    def u(kk_, shape, bound):
        return jax.random.uniform(kk_, shape, jnp.float32, -bound, bound)

    # Deterministic synthetic parameters (PyTorch-style Linear init scale).
    params = (
        u(keys[0], (d_model, hk), 1.0 / math.sqrt(d_model)),   # w_qs (in,out)
        u(keys[1], (1, hk), 1.0 / math.sqrt(d_model)),          # b_qs
        u(keys[2], (d_model, hk), 1.0 / math.sqrt(d_model)),   # w_ks
        u(keys[3], (1, hk), 1.0 / math.sqrt(d_model)),          # b_ks
        u(keys[4], (d_model, hv), 1.0 / math.sqrt(d_model)),   # w_vs
        u(keys[5], (1, hv), 1.0 / math.sqrt(d_model)),          # b_vs
        1.0 + 0.1 * u(keys[6], (1, hk), 1.0),                   # LN q gamma
        0.1 * u(keys[7], (1, hk), 1.0),                         # LN q beta
        1.0 + 0.1 * u(keys[8], (1, hk), 1.0),                   # LN k gamma
        0.1 * u(keys[9], (1, hk), 1.0),                         # LN k beta
        1.0 + 0.1 * u(keys[10], (1, hv), 1.0),                  # LN v gamma
        0.1 * u(keys[11], (1, hv), 1.0),                        # LN v beta
        u(keys[12], (hv, hv), 1.0 / math.sqrt(hv)),             # fc1 w (in,out)
        u(keys[13], (1, hv), 1.0 / math.sqrt(hv)),              # fc1 b
        u(keys[14], (hv, dout), 1.0 / math.sqrt(hv)),           # fc2 w (in,out)
        u(keys[15], (1, dout), 1.0 / math.sqrt(hv)),            # fc2 b
    )

    kq, kk, kv = jax.random.split(jax.random.PRNGKey(1), 3)
    q = jax.random.normal(kq, (B, L, d_model), jnp.float32)
    k = jax.random.normal(kk, (B, L, d_model), jnp.float32)
    v = jax.random.normal(kv, (B, L, d_model), jnp.float32)

    packed = pack_params(params)          # one-time packing, outside the jit
    out, residual, attn = multi_head_attention(
        packed, q, k, v, n_head=n_head, d_k=d_k, d_v=d_v, dout=dout)
    jax.block_until_ready((out, residual, attn))

    assert out.shape == (B, L, dout)
    assert residual.shape == (B, L, n_head, d_k)

    # (1) precision-matched reference (bf16 matmul operands, f32 accumulation):
    #     tight check of the kernel math.
    m_out, m_res, m_attn = _reference_matched(params, q, k, v, d_k=d_k)
    assert jnp.allclose(out, m_out, rtol=1e-2, atol=1e-2)
    assert jnp.allclose(residual, m_res.reshape(B, L, n_head, d_k), rtol=1e-2, atol=1e-2)
    assert jnp.allclose(attn, m_attn, rtol=1e-2, atol=1e-2)

    # (2) full-f32 reference mirroring the PyTorch module: looser tolerance
    #     covering the bf16 MXU operand policy.
    r_out, r_res, r_attn = _reference(
        params, q, k, v, n_head=n_head, d_k=d_k, d_v=d_v)
    assert attn.shape == r_attn.shape
    assert jnp.allclose(out, r_out, rtol=1e-1, atol=1e-1)
    assert jnp.allclose(residual, r_res, rtol=1e-1, atol=1e-1)
    assert jnp.allclose(attn, r_attn, rtol=1e-1, atol=1e-1)

    print("KERNEL_OK")
</pallas_src>

<mosaic_0001>
module attributes {stable_mosaic.version = 11 : i64} {
  func.func @_mha_kernel(%arg0: i32, %arg1: i32, %arg2: memref<1x8x32xf32, #tpu.memory_space<vmem>>, %arg3: memref<1x8x32xf32, #tpu.memory_space<vmem>>, %arg4: memref<1x8x32xf32, #tpu.memory_space<vmem>>, %arg5: memref<32x16xbf16, #tpu.memory_space<vmem>>, %arg6: memref<32x16xbf16, #tpu.memory_space<vmem>>, %arg7: memref<32x16xbf16, #tpu.memory_space<vmem>>, %arg8: memref<16x16xbf16, #tpu.memory_space<vmem>>, %arg9: memref<16x32xbf16, #tpu.memory_space<vmem>>, %arg10: memref<11x32xf32, #tpu.memory_space<vmem>>, %arg11: memref<1x8x32xf32, #tpu.memory_space<vmem>>, %arg12: memref<1x8x16xf32, #tpu.memory_space<vmem>>, %arg13: memref<1x1x8x8xf32, #tpu.memory_space<vmem>>) attributes {dimension_semantics = [#tpu.dimension_semantics<parallel>, #tpu.dimension_semantics<parallel>], iteration_bounds = array<i64: 2, 1>, scalar_prefetch = 0 : i64, scratch_operands = 0 : i64, tpu.core_type = #tpu.core_type<tc>, window_params = [{transform_indices = @transform_0, window_bounds = array<i64: 1, 8, 32>}, {transform_indices = @transform_1, window_bounds = array<i64: 1, 8, 32>}, {transform_indices = @transform_2, window_bounds = array<i64: 1, 8, 32>}, {pipeline_mode = #tpu.pipeline_mode<synchronous>, transform_indices = @transform_3, window_bounds = array<i64: 32, 16>}, {pipeline_mode = #tpu.pipeline_mode<synchronous>, transform_indices = @transform_4, window_bounds = array<i64: 32, 16>}, {pipeline_mode = #tpu.pipeline_mode<synchronous>, transform_indices = @transform_5, window_bounds = array<i64: 32, 16>}, {pipeline_mode = #tpu.pipeline_mode<synchronous>, transform_indices = @transform_6, window_bounds = array<i64: 16, 16>}, {pipeline_mode = #tpu.pipeline_mode<synchronous>, transform_indices = @transform_7, window_bounds = array<i64: 16, 32>}, {pipeline_mode = #tpu.pipeline_mode<synchronous>, transform_indices = @transform_8, window_bounds = array<i64: 11, 32>}, {transform_indices = @transform_9, window_bounds = array<i64: 1, 8, 32>}, {transform_indices = @transform_10, window_bounds = array<i64: 1, 8, 16>}, {transform_indices = @transform_11, window_bounds = array<i64: 1, 1, 8, 8>}]} {
    %c0 = arith.constant 0 : index
    %c0_0 = arith.constant 0 : index
    %0 = vector.load %arg10[%c0, %c0_0] : memref<11x32xf32, #tpu.memory_space<vmem>>, vector<11x32xf32>
    %1 = vector.extract_strided_slice %0 {offsets = [0, 0], sizes = [1, 16], strides = [1, 1]} : vector<11x32xf32> to vector<1x16xf32>
    %2 = vector.extract_strided_slice %0 {offsets = [1, 0], sizes = [1, 16], strides = [1, 1]} : vector<11x32xf32> to vector<1x16xf32>
    %3 = vector.extract_strided_slice %0 {offsets = [2, 0], sizes = [1, 16], strides = [1, 1]} : vector<11x32xf32> to vector<1x16xf32>
    %4 = vector.extract_strided_slice %0 {offsets = [3, 0], sizes = [1, 16], strides = [1, 1]} : vector<11x32xf32> to vector<1x16xf32>
    %5 = vector.extract_strided_slice %0 {offsets = [4, 0], sizes = [1, 16], strides = [1, 1]} : vector<11x32xf32> to vector<1x16xf32>
    %6 = vector.extract_strided_slice %0 {offsets = [5, 0], sizes = [1, 16], strides = [1, 1]} : vector<11x32xf32> to vector<1x16xf32>
    %7 = vector.extract_strided_slice %0 {offsets = [6, 0], sizes = [1, 16], strides = [1, 1]} : vector<11x32xf32> to vector<1x16xf32>
    %8 = vector.extract_strided_slice %0 {offsets = [7, 0], sizes = [1, 16], strides = [1, 1]} : vector<11x32xf32> to vector<1x16xf32>
    %9 = vector.extract_strided_slice %0 {offsets = [8, 0], sizes = [1, 16], strides = [1, 1]} : vector<11x32xf32> to vector<1x16xf32>
    %10 = vector.extract_strided_slice %0 {offsets = [9, 0], sizes = [1, 16], strides = [1, 1]} : vector<11x32xf32> to vector<1x16xf32>
    %11 = vector.extract_strided_slice %0 {offsets = [10, 0], sizes = [1, 32], strides = [1, 1]} : vector<11x32xf32> to vector<1x32xf32>
    %c0_1 = arith.constant 0 : index
    %c0_2 = arith.constant 0 : index
    %c0_3 = arith.constant 0 : index
    %12 = vector.load %arg2[%c0_1, %c0_2, %c0_3] : memref<1x8x32xf32, #tpu.memory_space<vmem>>, vector<1x8x32xf32>
    %13 = vector.shape_cast %12 : vector<1x8x32xf32> to vector<8x32xf32>
    %14 = arith.truncf %13 : vector<8x32xf32> to vector<8x32xbf16>
    %c0_4 = arith.constant 0 : index
    %c0_5 = arith.constant 0 : index
    %c0_6 = arith.constant 0 : index
    %15 = vector.load %arg3[%c0_4, %c0_5, %c0_6] : memref<1x8x32xf32, #tpu.memory_space<vmem>>, vector<1x8x32xf32>
    %16 = vector.shape_cast %15 : vector<1x8x32xf32> to vector<8x32xf32>
    %17 = arith.truncf %16 : vector<8x32xf32> to vector<8x32xbf16>
    %c0_7 = arith.constant 0 : index
    %c0_8 = arith.constant 0 : index
    %c0_9 = arith.constant 0 : index
    %18 = vector.load %arg4[%c0_7, %c0_8, %c0_9] : memref<1x8x32xf32, #tpu.memory_space<vmem>>, vector<1x8x32xf32>
    %19 = vector.shape_cast %18 : vector<1x8x32xf32> to vector<8x32xf32>
    %20 = arith.truncf %19 : vector<8x32xf32> to vector<8x32xbf16>
    %c0_10 = arith.constant 0 : index
    %c0_11 = arith.constant 0 : index
    %21 = vector.load %arg5[%c0_10, %c0_11] : memref<32x16xbf16, #tpu.memory_space<vmem>>, vector<32x16xbf16>
    %cst = arith.constant dense<0.000000e+00> : vector<8x16xf32>
    %22 = tpu.matmul %14, %21, %cst {dimension_numbers = #tpu.dot_dimension_numbers<[1], [0], [0], [1], [0, 0, 1, 1], [], []>} : vector<8x32xbf16>, vector<32x16xbf16>, vector<8x16xf32> -> vector<8x16xf32>
    %23 = vector.broadcast %1 : vector<1x16xf32> to vector<8x16xf32>
    %24 = arith.addf %22, %23 : vector<8x16xf32>
    %c0_12 = arith.constant 0 : index
    %c0_13 = arith.constant 0 : index
    %25 = vector.load %arg6[%c0_12, %c0_13] : memref<32x16xbf16, #tpu.memory_space<vmem>>, vector<32x16xbf16>
    %cst_14 = arith.constant dense<0.000000e+00> : vector<8x16xf32>
    %26 = tpu.matmul %17, %25, %cst_14 {dimension_numbers = #tpu.dot_dimension_numbers<[1], [0], [0], [1], [0, 0, 1, 1], [], []>} : vector<8x32xbf16>, vector<32x16xbf16>, vector<8x16xf32> -> vector<8x16xf32>
    %27 = vector.broadcast %2 : vector<1x16xf32> to vector<8x16xf32>
    %28 = arith.addf %26, %27 : vector<8x16xf32>
    %c0_15 = arith.constant 0 : index
    %c0_16 = arith.constant 0 : index
    %29 = vector.load %arg7[%c0_15, %c0_16] : memref<32x16xbf16, #tpu.memory_space<vmem>>, vector<32x16xbf16>
    %cst_17 = arith.constant dense<0.000000e+00> : vector<8x16xf32>
    %30 = tpu.matmul %20, %29, %cst_17 {dimension_numbers = #tpu.dot_dimension_numbers<[1], [0], [0], [1], [0, 0, 1, 1], [], []>} : vector<8x32xbf16>, vector<32x16xbf16>, vector<8x16xf32> -> vector<8x16xf32>
    %31 = vector.broadcast %3 : vector<1x16xf32> to vector<8x16xf32>
    %32 = arith.addf %30, %31 : vector<8x16xf32>
    %c0_18 = arith.constant 0 : index
    %c0_19 = arith.constant 0 : index
    %c0_20 = arith.constant 0 : index
    %33 = vector.load %arg12[%c0_18, %c0_19, %c0_20] : memref<1x8x16xf32, #tpu.memory_space<vmem>>, vector<1x8x16xf32>
    %34 = vector.shape_cast %33 : vector<1x8x16xf32> to vector<8x16xf32>
    %35 = vector.shape_cast %24 : vector<8x16xf32> to vector<1x8x16xf32>
    tpu.vector_store %arg12[%c0_18, %c0_19, %c0_20], %35 {strides = array<i32>} : memref<1x8x16xf32, #tpu.memory_space<vmem>>, vector<1x8x16xf32>,
    %cst_21 = arith.constant dense<0.000000e+00> : vector<8xf32>
    %36 = vector.multi_reduction <add>, %24, %cst_21 [1] : vector<8x16xf32> to vector<8xf32>
    %37 = vector.shape_cast %36 : vector<8xf32> to vector<8x1xf32>
    %cst_22 = arith.constant 1.600000e+01 : f32
    %38 = vector.broadcast %cst_22 : f32 to vector<8x1xf32>
    %39 = arith.divf %37, %38 : vector<8x1xf32>
    %40 = vector.broadcast %39 : vector<8x1xf32> to vector<8x16xf32>
    %41 = arith.subf %24, %40 : vector<8x16xf32>
    %42 = arith.mulf %41, %41 : vector<8x16xf32>
    %cst_23 = arith.constant dense<0.000000e+00> : vector<8xf32>
    %43 = vector.multi_reduction <add>, %42, %cst_23 [1] : vector<8x16xf32> to vector<8xf32>
    %44 = vector.shape_cast %43 : vector<8xf32> to vector<8x1xf32>
    %cst_24 = arith.constant 1.600000e+01 : f32
    %45 = vector.broadcast %cst_24 : f32 to vector<8x1xf32>
    %46 = arith.divf %44, %45 : vector<8x1xf32>
    %47 = vector.broadcast %39 : vector<8x1xf32> to vector<8x16xf32>
    %48 = arith.subf %24, %47 : vector<8x16xf32>
    %cst_25 = arith.constant 9.99999997E-7 : f32
    %49 = vector.broadcast %cst_25 : f32 to vector<8x1xf32>
    %50 = arith.addf %46, %49 : vector<8x1xf32>
    %51 = math.rsqrt %50 : vector<8x1xf32>
    %52 = vector.broadcast %51 : vector<8x1xf32> to vector<8x16xf32>
    %53 = arith.mulf %48, %52 : vector<8x16xf32>
    %54 = vector.broadcast %4 : vector<1x16xf32> to vector<8x16xf32>
    %55 = arith.mulf %53, %54 : vector<8x16xf32>
    %56 = vector.broadcast %5 : vector<1x16xf32> to vector<8x16xf32>
    %57 = arith.addf %55, %56 : vector<8x16xf32>
    %cst_26 = arith.constant dense<0.000000e+00> : vector<8xf32>
    %58 = vector.multi_reduction <add>, %28, %cst_26 [1] : vector<8x16xf32> to vector<8xf32>
    %59 = vector.shape_cast %58 : vector<8xf32> to vector<8x1xf32>
    %cst_27 = arith.constant 1.600000e+01 : f32
    %60 = vector.broadcast %cst_27 : f32 to vector<8x1xf32>
    %61 = arith.divf %59, %60 : vector<8x1xf32>
    %62 = vector.broadcast %61 : vector<8x1xf32> to vector<8x16xf32>
    %63 = arith.subf %28, %62 : vector<8x16xf32>
    %64 = arith.mulf %63, %63 : vector<8x16xf32>
    %cst_28 = arith.constant dense<0.000000e+00> : vector<8xf32>
    %65 = vector.multi_reduction <add>, %64, %cst_28 [1] : vector<8x16xf32> to vector<8xf32>
    %66 = vector.shape_cast %65 : vector<8xf32> to vector<8x1xf32>
    %cst_29 = arith.constant 1.600000e+01 : f32
    %67 = vector.broadcast %cst_29 : f32 to vector<8x1xf32>
    %68 = arith.divf %66, %67 : vector<8x1xf32>
    %69 = vector.broadcast %61 : vector<8x1xf32> to vector<8x16xf32>
    %70 = arith.subf %28, %69 : vector<8x16xf32>
    %cst_30 = arith.constant 9.99999997E-7 : f32
    %71 = vector.broadcast %cst_30 : f32 to vector<8x1xf32>
    %72 = arith.addf %68, %71 : vector<8x1xf32>
    %73 = math.rsqrt %72 : vector<8x1xf32>
    %74 = vector.broadcast %73 : vector<8x1xf32> to vector<8x16xf32>
    %75 = arith.mulf %70, %74 : vector<8x16xf32>
    %76 = vector.broadcast %6 : vector<1x16xf32> to vector<8x16xf32>
    %77 = arith.mulf %75, %76 : vector<8x16xf32>
    %78 = vector.broadcast %7 : vector<1x16xf32> to vector<8x16xf32>
    %79 = arith.addf %77, %78 : vector<8x16xf32>
    %cst_31 = arith.constant dense<0.000000e+00> : vector<8xf32>
    %80 = vector.multi_reduction <add>, %32, %cst_31 [1] : vector<8x16xf32> to vector<8xf32>
    %81 = vector.shape_cast %80 : vector<8xf32> to vector<8x1xf32>
    %cst_32 = arith.constant 1.600000e+01 : f32
    %82 = vector.broadcast %cst_32 : f32 to vector<8x1xf32>
    %83 = arith.divf %81, %82 : vector<8x1xf32>
    %84 = vector.broadcast %83 : vector<8x1xf32> to vector<8x16xf32>
    %85 = arith.subf %32, %84 : vector<8x16xf32>
    %86 = arith.mulf %85, %85 : vector<8x16xf32>
    %cst_33 = arith.constant dense<0.000000e+00> : vector<8xf32>
    %87 = vector.multi_reduction <add>, %86, %cst_33 [1] : vector<8x16xf32> to vector<8xf32>
    %88 = vector.shape_cast %87 : vector<8xf32> to vector<8x1xf32>
    %cst_34 = arith.constant 1.600000e+01 : f32
    %89 = vector.broadcast %cst_34 : f32 to vector<8x1xf32>
    %90 = arith.divf %88, %89 : vector<8x1xf32>
    %91 = vector.broadcast %83 : vector<8x1xf32> to vector<8x16xf32>
    %92 = arith.subf %32, %91 : vector<8x16xf32>
    %cst_35 = arith.constant 9.99999997E-7 : f32
    %93 = vector.broadcast %cst_35 : f32 to vector<8x1xf32>
    %94 = arith.addf %90, %93 : vector<8x1xf32>
    %95 = math.rsqrt %94 : vector<8x1xf32>
    %96 = vector.broadcast %95 : vector<8x1xf32> to vector<8x16xf32>
    %97 = arith.mulf %92, %96 : vector<8x16xf32>
    %98 = vector.broadcast %8 : vector<1x16xf32> to vector<8x16xf32>
    %99 = arith.mulf %97, %98 : vector<8x16xf32>
    %100 = vector.broadcast %9 : vector<1x16xf32> to vector<8x16xf32>
    %101 = arith.addf %99, %100 : vector<8x16xf32>
    %cst_36 = arith.constant 2.500000e-01 : f32
    %102 = vector.broadcast %cst_36 : f32 to vector<8x16xf32>
    %103 = arith.mulf %57, %102 : vector<8x16xf32>
    %104 = arith.truncf %103 : vector<8x16xf32> to vector<8x16xbf16>
    %105 = arith.truncf %79 : vector<8x16xf32> to vector<8x16xbf16>
    %106 = arith.truncf %101 : vector<8x16xf32> to vector<8x16xbf16>
    %cst_37 = arith.constant dense<0.000000e+00> : vector<8x8xf32>
    %107 = tpu.matmul %104, %105, %cst_37 {dimension_numbers = #tpu.dot_dimension_numbers<[1], [1], [0], [0], [0, 0, 1, 0], [], []>} : vector<8x16xbf16>, vector<8x16xbf16>, vector<8x8xf32> -> vector<8x8xf32>
    %cst_38 = arith.constant dense<0xFF800000> : vector<8xf32>
    %108 = vector.multi_reduction <maximumf>, %107, %cst_38 [1] : vector<8x8xf32> to vector<8xf32>
    %109 = vector.shape_cast %108 : vector<8xf32> to vector<8x1xf32>
    %110 = vector.broadcast %109 : vector<8x1xf32> to vector<8x8xf32>
    %111 = arith.subf %107, %110 : vector<8x8xf32>
    %112 = math.exp %111 : vector<8x8xf32>
    %cst_39 = arith.constant dense<0.000000e+00> : vector<8xf32>
    %113 = vector.multi_reduction <add>, %112, %cst_39 [1] : vector<8x8xf32> to vector<8xf32>
    %114 = vector.shape_cast %113 : vector<8xf32> to vector<8x1xf32>
    %115 = tpu.reciprocal %114 {approx = true} : vector<8x1xf32> -> vector<8x1xf32>
    %116 = vector.broadcast %115 : vector<8x1xf32> to vector<8x8xf32>
    %117 = arith.mulf %112, %116 : vector<8x8xf32>
    %118 = vector.shape_cast %117 : vector<8x8xf32> to vector<1x8x8xf32>
    %c0_40 = arith.constant 0 : index
    %c0_41 = arith.constant 0 : index
    %c0_42 = arith.constant 0 : index
    %c0_43 = arith.constant 0 : index
    %119 = vector.load %arg13[%c0_40, %c0_41, %c0_42, %c0_43] : memref<1x1x8x8xf32, #tpu.memory_space<vmem>>, vector<1x1x8x8xf32>
    %120 = vector.shape_cast %119 : vector<1x1x8x8xf32> to vector<1x8x8xf32>
    %121 = vector.shape_cast %118 : vector<1x8x8xf32> to vector<1x1x8x8xf32>
    tpu.vector_store %arg13[%c0_40, %c0_41, %c0_42, %c0_43], %121 {strides = array<i32>} : memref<1x1x8x8xf32, #tpu.memory_space<vmem>>, vector<1x1x8x8xf32>,
    %122 = arith.truncf %117 : vector<8x8xf32> to vector<8x8xbf16>
    %cst_44 = arith.constant dense<0.000000e+00> : vector<8x16xf32>
    %123 = tpu.matmul %122, %106, %cst_44 {dimension_numbers = #tpu.dot_dimension_numbers<[1], [0], [0], [1], [0, 0, 1, 1], [], []>} : vector<8x8xbf16>, vector<8x16xbf16>, vector<8x16xf32> -> vector<8x16xf32>
    %124 = arith.truncf %123 : vector<8x16xf32> to vector<8x16xbf16>
    %c0_45 = arith.constant 0 : index
    %c0_46 = arith.constant 0 : index
    %125 = vector.load %arg8[%c0_45, %c0_46] : memref<16x16xbf16, #tpu.memory_space<vmem>>, vector<16x16xbf16>
    %cst_47 = arith.constant dense<0.000000e+00> : vector<8x16xf32>
    %126 = tpu.matmul %124, %125, %cst_47 {dimension_numbers = #tpu.dot_dimension_numbers<[1], [0], [0], [1], [0, 0, 1, 1], [], []>} : vector<8x16xbf16>, vector<16x16xbf16>, vector<8x16xf32> -> vector<8x16xf32>
    %127 = vector.broadcast %10 : vector<1x16xf32> to vector<8x16xf32>
    %128 = arith.addf %126, %127 : vector<8x16xf32>
    %cst_48 = arith.constant 0.000000e+00 : f32
    %129 = vector.broadcast %cst_48 : f32 to vector<8x16xf32>
    %130 = arith.maximumf %128, %129 : vector<8x16xf32>
    %131 = arith.truncf %130 : vector<8x16xf32> to vector<8x16xbf16>
    %c0_49 = arith.constant 0 : index
    %c0_50 = arith.constant 0 : index
    %132 = vector.load %arg9[%c0_49, %c0_50] : memref<16x32xbf16, #tpu.memory_space<vmem>>, vector<16x32xbf16>
    %cst_51 = arith.constant dense<0.000000e+00> : vector<8x32xf32>
    %133 = tpu.matmul %131, %132, %cst_51 {dimension_numbers = #tpu.dot_dimension_numbers<[1], [0], [0], [1], [0, 0, 1, 1], [], []>} : vector<8x16xbf16>, vector<16x32xbf16>, vector<8x32xf32> -> vector<8x32xf32>
    %134 = vector.broadcast %11 : vector<1x32xf32> to vector<8x32xf32>
    %135 = arith.addf %133, %134 : vector<8x32xf32>
    %c0_52 = arith.constant 0 : index
    %c0_53 = arith.constant 0 : index
    %c0_54 = arith.constant 0 : index
    %136 = vector.load %arg11[%c0_52, %c0_53, %c0_54] : memref<1x8x32xf32, #tpu.memory_space<vmem>>, vector<1x8x32xf32>
    %137 = vector.shape_cast %136 : vector<1x8x32xf32> to vector<8x32xf32>
    %138 = vector.shape_cast %135 : vector<8x32xf32> to vector<1x8x32xf32>
    tpu.vector_store %arg11[%c0_52, %c0_53, %c0_54], %138 {strides = array<i32>} : memref<1x8x32xf32, #tpu.memory_space<vmem>>, vector<1x8x32xf32>,
    return
  }
  func.func @transform_0(%arg0: i32, %arg1: i32) -> (i32, i32, i32) {
    %c0_i32 = arith.constant 0 : i32
    %c0_i32_0 = arith.constant 0 : i32
    return %arg0, %arg1, %c0_i32 : i32, i32, i32
  }
  func.func @transform_1(%arg0: i32, %arg1: i32) -> (i32, i32, i32) {
    %c0_i32 = arith.constant 0 : i32
    %c0_i32_0 = arith.constant 0 : i32
    %c0_i32_1 = arith.constant 0 : i32
    return %arg0, %c0_i32, %c0_i32_0 : i32, i32, i32
  }
  func.func @transform_2(%arg0: i32, %arg1: i32) -> (i32, i32, i32) {
    %c0_i32 = arith.constant 0 : i32
    %c0_i32_0 = arith.constant 0 : i32
    %c0_i32_1 = arith.constant 0 : i32
    return %arg0, %c0_i32, %c0_i32_0 : i32, i32, i32
  }
  func.func @transform_3(%arg0: i32, %arg1: i32) -> (i32, i32) {
    %c0_i32 = arith.constant 0 : i32
    %c0_i32_0 = arith.constant 0 : i32
    %c0_i32_1 = arith.constant 0 : i32
    return %c0_i32, %c0_i32_0 : i32, i32
  }
  func.func @transform_4(%arg0: i32, %arg1: i32) -> (i32, i32) {
    %c0_i32 = arith.constant 0 : i32
    %c0_i32_0 = arith.constant 0 : i32
    %c0_i32_1 = arith.constant 0 : i32
    return %c0_i32, %c0_i32_0 : i32, i32
  }
  func.func @transform_5(%arg0: i32, %arg1: i32) -> (i32, i32) {
    %c0_i32 = arith.constant 0 : i32
    %c0_i32_0 = arith.constant 0 : i32
    %c0_i32_1 = arith.constant 0 : i32
    return %c0_i32, %c0_i32_0 : i32, i32
  }
  func.func @transform_6(%arg0: i32, %arg1: i32) -> (i32, i32) {
    %c0_i32 = arith.constant 0 : i32
    %c0_i32_0 = arith.constant 0 : i32
    %c0_i32_1 = arith.constant 0 : i32
    return %c0_i32, %c0_i32_0 : i32, i32
  }
  func.func @transform_7(%arg0: i32, %arg1: i32) -> (i32, i32) {
    %c0_i32 = arith.constant 0 : i32
    %c0_i32_0 = arith.constant 0 : i32
    %c0_i32_1 = arith.constant 0 : i32
    return %c0_i32, %c0_i32_0 : i32, i32
  }
  func.func @transform_8(%arg0: i32, %arg1: i32) -> (i32, i32) {
    %c0_i32 = arith.constant 0 : i32
    %c0_i32_0 = arith.constant 0 : i32
    %c0_i32_1 = arith.constant 0 : i32
    return %c0_i32, %c0_i32_0 : i32, i32
  }
  func.func @transform_9(%arg0: i32, %arg1: i32) -> (i32, i32, i32) {
    %c0_i32 = arith.constant 0 : i32
    %c0_i32_0 = arith.constant 0 : i32
    return %arg0, %arg1, %c0_i32 : i32, i32, i32
  }
  func.func @transform_10(%arg0: i32, %arg1: i32) -> (i32, i32, i32) {
    %c0_i32 = arith.constant 0 : i32
    %c0_i32_0 = arith.constant 0 : i32
    return %arg0, %arg1, %c0_i32 : i32, i32, i32
  }
  func.func @transform_11(%arg0: i32, %arg1: i32) -> (i32, i32, i32, i32) {
    %c0_i32 = arith.constant 0 : i32
    %c0_i32_0 = arith.constant 0 : i32
    %c0_i32_1 = arith.constant 0 : i32
    return %arg0, %c0_i32, %arg1, %c0_i32_0 : i32, i32, i32, i32
  }
}

</mosaic_0001>

<llo_original>
// kernel: multi_head_attention.1
$region0: #{multi_head_attention.1}
  #allocation0 [shape = 'u32[]', space=smem, size = 0x4, offset = 0x4, fixed_abs, tag = 'smem constant byte address 0x4 - core index']
  #allocation1 [shape = 'u32[144,128]{1,0:T(1,128)}', space=vmem, size = 0x12000, scoped, tag = 'internal scratch']
  %s0 = inlined_call_operand.vmem [shape: f32[2,8,32], index: 0, kind: input, shape index: {}]
  %s1 = inlined_call_operand.vmem [shape: f32[2,8,32], index: 1, kind: input, shape index: {}]
  %s2 = inlined_call_operand.vmem [shape: f32[2,8,32], index: 2, kind: input, shape index: {}]
  %s3 = inlined_call_operand.vmem [shape: bf16[32,16], index: 3, kind: input, shape index: {}]
  %s4 = inlined_call_operand.vmem [shape: bf16[32,16], index: 4, kind: input, shape index: {}]
  %s5 = inlined_call_operand.vmem [shape: bf16[32,16], index: 5, kind: input, shape index: {}]
  %s6 = inlined_call_operand.vmem [shape: bf16[16,16], index: 6, kind: input, shape index: {}]
  %s7 = inlined_call_operand.hbm [shape: bf16[16,32], index: 7, kind: input, shape index: {}]
  %s8 = inlined_call_operand.vmem [shape: f32[11,32], index: 8, kind: input, shape index: {}]
  %s9 = inlined_call_operand.hbm [shape: f32[2,8,32], index: 9, kind: output, shape index: {0}]
  %s10 = inlined_call_operand.hbm [shape: f32[2,8,16], index: 10, kind: output, shape index: {1}]
  %s11 = inlined_call_operand.hbm [shape: f32[2,1,8,8], index: 11, kind: output, shape index: {2}]
  %12 = xla_tuple %s9, %s10, %s11
  %s13 = sld [smem:[#allocation0]]
  $region89: #{multi_head_attention.1} parent=0
    _
  %s15 = ssub.s32 1, %s13
  %s16 = scalar_select 0, %s15, %s13
  $region1: #{multi_head_attention.1} parent=0
    #allocation2 [shape = 'u8[4096]{0}', space=vmem, size = 0x1000, scoped, tag = 'input window, operand 7, single buffered']
    #allocation3 [shape = 's32[2]{0}', space=sflag, size = 0x8, scoped, tag = 'scoped memory for multi_head_attention.1']
    #allocation4 [shape = 's32[2]{0}', space=sflag, size = 0x8, scoped, tag = 'scoped memory for multi_head_attention.1']
    #allocation5 [shape = 'u8[8192]{0}', space=vmem, size = 0x2000, scoped, tag = 'output window, operand 0']
    #allocation6 [shape = 'u8[8192]{0}', space=vmem, size = 0x2000, scoped, tag = 'output window, operand 1']
    #allocation7 [shape = 's32[2]{0}', space=sflag, size = 0x8, scoped, tag = 'scoped memory for multi_head_attention.1']
    #allocation8 [shape = 'u8[8192]{0}', space=vmem, size = 0x2000, scoped, tag = 'output window, operand 2']
    %17 = vsyncpa [#allocation3], 0
    %18 = vsyncpa [#allocation4], 0
    %s19 = scalar_lea.sflag [#allocation4], 1
    %20 = vsyncpa %s19, 0
    %21 = vsyncpa [#allocation7], 0
    %s22 = scalar_lea.sflag [#allocation7], 1
    %23 = vsyncpa %s22, 0
    loop: start=0, step=1, limit=4
    $region2: #{multi_head_attention.1} parent=1 // loop_pre_header
      _
    $region3: #{multi_head_attention.1} parent=1 // loop_header
      %s25 = sphi 0, %s29
      %p26 = scmp.ge.s32.totalorder %s25, 4
      %s32 = sphi 0, %s44
      %s33 = sphi 0, %s40
      %s34 = sphi 0, %s32
      %s35 = sphi 0, %s33
      %s36 = sphi 0, %s34
      %s37 = sphi 0, %s35
      %s49 = sphi 0, %s51
      %s52 = sphi 0, %s49
      %s53 = sphi 0, %s52
      %s69 = sphi 0, %s53
      %s75 = sphi 0, %s77
      %s78 = sphi 0, %s75
      %s79 = sphi 0, %s78
      %s95 = sphi 0, %s79
      %s101 = sphi 0, %s103
      %s104 = sphi 0, %s101
      %s105 = sphi 0, %s104
      %s121 = sphi 0, %s105
      %s125 = sphi 0, %s125
      %s127 = sphi 0, %s125
      %s128 = sphi 0, %s127
      %s142 = sphi 0, %s128
      %s146 = sphi 0, %s146
      %s148 = sphi 0, %s146
      %s149 = sphi 0, %s148
      %s163 = sphi 0, %s149
      %s167 = sphi 0, %s167
      %s169 = sphi 0, %s167
      %s170 = sphi 0, %s169
      %s184 = sphi 0, %s170
      %s188 = sphi 0, %s188
      %s190 = sphi 0, %s188
      %s191 = sphi 0, %s190
      %s205 = sphi 0, %s191
      %s209 = sphi 0, %s209
      %s211 = sphi 0, %s209
      %s212 = sphi 0, %s211
      %s226 = sphi 0, %s212
      %s230 = sphi 0, %s230
      %s232 = sphi 0, %s230
      %s233 = sphi 0, %s232
      %s247 = sphi 0, %s233
      %s255 = sphi 0, %s257
      %s258 = sphi 0, %s255
      %s259 = sphi 0, %s258
      %s275 = sphi 0, %s259
      %s283 = sphi 0, %s285
      %s286 = sphi 0, %s283
      %s287 = sphi 0, %s286
      %s303 = sphi 0, %s287
      %s311 = sphi 0, %s313
      %s314 = sphi 0, %s311
      %s315 = sphi 0, %s314
      %s331 = sphi 0, %s315
    $region4: #{multi_head_attention.1} parent=1 // loop_header_branch
      %28 = sbr.rel (%p26) target = $region8
    $region5: #{multi_head_attention.1} parent=1 // loop_body
      %s30 = ssub.s32 %s25, 1
      %s31 = ssub.s32 %s25, 2
      %s38 = sadd.s32 1, %s33
      %p39 = scmp.ge.s32.totalorder %s38, 1
      %s40 = scalar_select %p39, 0, %s38
      %s41 = sadd.s32 1, %s32
      %s42 = scalar_select %p39, %s41, %s32
      %p43 = scmp.ge.s32.totalorder %s42, 2
      %s44 = scalar_select %p43, 0, %s42
      %s45 = ssub.s32 %s32, %s44
      %s46 = ssub.s32 %s33, %s40
      %s47 = sor.u32 %s45, %s46
      %p48 = scmp.eq.s32.totalorder %s47, 0
      %s50 = sadd.s32 %s49, 1
      %s51 = scalar_select %p48, %s49, %s50
      %p54 = pneg %p48
      %p55 = scmp.eq.s32.totalorder %s25, 1
      %p56 = por %p54, %p55
      %p57 = scmp.ne.s32.totalorder %s49, %s52
      %p58 = scmp.eq.s32.totalorder %s25, 0
      %p59 = por %p57, %p58
      %p60 = scmp.ne.s32.totalorder %s49, %s52
      %p61 = scmp.eq.s32.totalorder %s30, 1
      %p62 = por %p60, %p61
      %p63 = scmp.ne.s32.totalorder %s52, %s53
      %p64 = scmp.eq.s32.totalorder %s30, 0
      %p65 = por %p63, %p64
      %p66 = scmp.ne.s32.totalorder %s52, %s53
      %p67 = scmp.eq.s32.totalorder %s31, 1
      %p68 = por %p66, %p67
      %p70 = scmp.ne.s32.totalorder %s53, %s69
      %p71 = scmp.eq.s32.totalorder %s31, 0
      %p72 = por %p70, %p71
      %s73 = ssub.s32 %s32, %s44
      %p74 = scmp.eq.s32.totalorder %s73, 0
      %s76 = sadd.s32 %s75, 1
      %s77 = scalar_select %p74, %s75, %s76
      %p80 = pneg %p74
      %p81 = scmp.eq.s32.totalorder %s25, 1
      %p82 = por %p80, %p81
      %p83 = scmp.ne.s32.totalorder %s75, %s78
      %p84 = scmp.eq.s32.totalorder %s25, 0
      %p85 = por %p83, %p84
      %p86 = scmp.ne.s32.totalorder %s75, %s78
      %p87 = scmp.eq.s32.totalorder %s30, 1
      %p88 = por %p86, %p87
      %p89 = scmp.ne.s32.totalorder %s78, %s79
      %p90 = scmp.eq.s32.totalorder %s30, 0
      %p91 = por %p89, %p90
      %p92 = scmp.ne.s32.totalorder %s78, %s79
      %p93 = scmp.eq.s32.totalorder %s31, 1
      %p94 = por %p92, %p93
      %p96 = scmp.ne.s32.totalorder %s79, %s95
      %p97 = scmp.eq.s32.totalorder %s31, 0
      %p98 = por %p96, %p97
      %s99 = ssub.s32 %s32, %s44
      %p100 = scmp.eq.s32.totalorder %s99, 0
      %s102 = sadd.s32 %s101, 1
      %s103 = scalar_select %p100, %s101, %s102
      %p106 = pneg %p100
      %p107 = scmp.eq.s32.totalorder %s25, 1
      %p108 = por %p106, %p107
      %p109 = scmp.ne.s32.totalorder %s101, %s104
      %p110 = scmp.eq.s32.totalorder %s25, 0
      %p111 = por %p109, %p110
      %p112 = scmp.ne.s32.totalorder %s101, %s104
      %p113 = scmp.eq.s32.totalorder %s30, 1
      %p114 = por %p112, %p113
      %p115 = scmp.ne.s32.totalorder %s104, %s105
      %p116 = scmp.eq.s32.totalorder %s30, 0
      %p117 = por %p115, %p116
      %p118 = scmp.ne.s32.totalorder %s104, %s105
      %p119 = scmp.eq.s32.totalorder %s31, 1
      %p120 = por %p118, %p119
      %p122 = scmp.ne.s32.totalorder %s105, %s121
      %p123 = scmp.eq.s32.totalorder %s31, 0
      %p124 = por %p122, %p123
      %s126 = sadd.s32 %s125, 1
      %p129 = scmp.eq.s32.totalorder %s25, 1
      %p130 = scmp.ne.s32.totalorder %s125, %s127
      %p131 = scmp.eq.s32.totalorder %s25, 0
      %p132 = por %p130, %p131
      %p133 = scmp.ne.s32.totalorder %s125, %s127
      %p134 = scmp.eq.s32.totalorder %s30, 1
      %p135 = por %p133, %p134
      %p136 = scmp.ne.s32.totalorder %s127, %s128
      %p137 = scmp.eq.s32.totalorder %s30, 0
      %p138 = por %p136, %p137
      %p139 = scmp.ne.s32.totalorder %s127, %s128
      %p140 = scmp.eq.s32.totalorder %s31, 1
      %p141 = por %p139, %p140
      %p143 = scmp.ne.s32.totalorder %s128, %s142
      %p144 = scmp.eq.s32.totalorder %s31, 0
      %p145 = por %p143, %p144
      %s147 = sadd.s32 %s146, 1
      %p150 = scmp.eq.s32.totalorder %s25, 1
      %p151 = scmp.ne.s32.totalorder %s146, %s148
      %p152 = scmp.eq.s32.totalorder %s25, 0
      %p153 = por %p151, %p152
      %p154 = scmp.ne.s32.totalorder %s146, %s148
      %p155 = scmp.eq.s32.totalorder %s30, 1
      %p156 = por %p154, %p155
      %p157 = scmp.ne.s32.totalorder %s148, %s149
      %p158 = scmp.eq.s32.totalorder %s30, 0
      %p159 = por %p157, %p158
      %p160 = scmp.ne.s32.totalorder %s148, %s149
      %p161 = scmp.eq.s32.totalorder %s31, 1
      %p162 = por %p160, %p161
      %p164 = scmp.ne.s32.totalorder %s149, %s163
      %p165 = scmp.eq.s32.totalorder %s31, 0
      %p166 = por %p164, %p165
      %s168 = sadd.s32 %s167, 1
      %p171 = scmp.eq.s32.totalorder %s25, 1
      %p172 = scmp.ne.s32.totalorder %s167, %s169
      %p173 = scmp.eq.s32.totalorder %s25, 0
      %p174 = por %p172, %p173
      %p175 = scmp.ne.s32.totalorder %s167, %s169
      %p176 = scmp.eq.s32.totalorder %s30, 1
      %p177 = por %p175, %p176
      %p178 = scmp.ne.s32.totalorder %s169, %s170
      %p179 = scmp.eq.s32.totalorder %s30, 0
      %p180 = por %p178, %p179
      %p181 = scmp.ne.s32.totalorder %s169, %s170
      %p182 = scmp.eq.s32.totalorder %s31, 1
      %p183 = por %p181, %p182
      %p185 = scmp.ne.s32.totalorder %s170, %s184
      %p186 = scmp.eq.s32.totalorder %s31, 0
      %p187 = por %p185, %p186
      %s189 = sadd.s32 %s188, 1
      %p192 = scmp.eq.s32.totalorder %s25, 1
      %p193 = scmp.ne.s32.totalorder %s188, %s190
      %p194 = scmp.eq.s32.totalorder %s25, 0
      %p195 = por %p193, %p194
      %p196 = scmp.ne.s32.totalorder %s188, %s190
      %p197 = scmp.eq.s32.totalorder %s30, 1
      %p198 = por %p196, %p197
      %p199 = scmp.ne.s32.totalorder %s190, %s191
      %p200 = scmp.eq.s32.totalorder %s30, 0
      %p201 = por %p199, %p200
      %p202 = scmp.ne.s32.totalorder %s190, %s191
      %p203 = scmp.eq.s32.totalorder %s31, 1
      %p204 = por %p202, %p203
      %p206 = scmp.ne.s32.totalorder %s191, %s205
      %p207 = scmp.eq.s32.totalorder %s31, 0
      %p208 = por %p206, %p207
      %s210 = sadd.s32 %s209, 1
      %p213 = scmp.eq.s32.totalorder %s25, 1
      %p214 = scmp.ne.s32.totalorder %s209, %s211
      %p215 = scmp.eq.s32.totalorder %s25, 0
      %p216 = por %p214, %p215
      %p217 = scmp.ne.s32.totalorder %s209, %s211
      %p218 = scmp.eq.s32.totalorder %s30, 1
      %p219 = por %p217, %p218
      %p220 = scmp.ne.s32.totalorder %s211, %s212
      %p221 = scmp.eq.s32.totalorder %s30, 0
      %p222 = por %p220, %p221
      %p223 = scmp.ne.s32.totalorder %s211, %s212
      %p224 = scmp.eq.s32.totalorder %s31, 1
      %p225 = por %p223, %p224
      %p227 = scmp.ne.s32.totalorder %s212, %s226
      %p228 = scmp.eq.s32.totalorder %s31, 0
      %p229 = por %p227, %p228
      %s231 = sadd.s32 %s230, 1
      %p234 = scmp.eq.s32.totalorder %s25, 1
      %p235 = scmp.ne.s32.totalorder %s230, %s232
      %p236 = scmp.eq.s32.totalorder %s25, 0
      %p237 = por %p235, %p236
      %p238 = scmp.ne.s32.totalorder %s230, %s232
      %p239 = scmp.eq.s32.totalorder %s30, 1
      %p240 = por %p238, %p239
      %p241 = scmp.ne.s32.totalorder %s232, %s233
      %p242 = scmp.eq.s32.totalorder %s30, 0
      %p243 = por %p241, %p242
      %p244 = scmp.ne.s32.totalorder %s232, %s233
      %p245 = scmp.eq.s32.totalorder %s31, 1
      %p246 = por %p244, %p245
      %p248 = scmp.ne.s32.totalorder %s233, %s247
      %p249 = scmp.eq.s32.totalorder %s31, 0
      %p250 = por %p248, %p249
      %s251 = ssub.s32 %s32, %s44
      %s252 = ssub.s32 %s33, %s40
      %s253 = sor.u32 %s251, %s252
      %p254 = scmp.eq.s32.totalorder %s253, 0
      %s256 = sadd.s32 %s255, 1
      %s257 = scalar_select %p254, %s255, %s256
      %p260 = pneg %p254
      %p261 = scmp.eq.s32.totalorder %s25, 1
      %p262 = por %p260, %p261
      %p263 = scmp.ne.s32.totalorder %s255, %s258
      %p264 = scmp.eq.s32.totalorder %s25, 0
      %p265 = por %p263, %p264
      %p266 = scmp.ne.s32.totalorder %s255, %s258
      %p267 = scmp.eq.s32.totalorder %s30, 1
      %p268 = por %p266, %p267
      %p269 = scmp.ne.s32.totalorder %s258, %s259
      %p270 = scmp.eq.s32.totalorder %s30, 0
      %p271 = por %p269, %p270
      %p272 = scmp.ne.s32.totalorder %s258, %s259
      %p273 = scmp.eq.s32.totalorder %s31, 1
      %p274 = por %p272, %p273
      %p276 = scmp.ne.s32.totalorder %s259, %s275
      %p277 = scmp.eq.s32.totalorder %s31, 0
      %p278 = por %p276, %p277
      %s279 = ssub.s32 %s32, %s44
      %s280 = ssub.s32 %s33, %s40
      %s281 = sor.u32 %s279, %s280
      %p282 = scmp.eq.s32.totalorder %s281, 0
      %s284 = sadd.s32 %s283, 1
      %s285 = scalar_select %p282, %s283, %s284
      %p288 = pneg %p282
      %p289 = scmp.eq.s32.totalorder %s25, 1
      %p290 = por %p288, %p289
      %p291 = scmp.ne.s32.totalorder %s283, %s286
      %p292 = scmp.eq.s32.totalorder %s25, 0
      %p293 = por %p291, %p292
      %p294 = scmp.ne.s32.totalorder %s283, %s286
      %p295 = scmp.eq.s32.totalorder %s30, 1
      %p296 = por %p294, %p295
      %p297 = scmp.ne.s32.totalorder %s286, %s287
      %p298 = scmp.eq.s32.totalorder %s30, 0
      %p299 = por %p297, %p298
      %p300 = scmp.ne.s32.totalorder %s286, %s287
      %p301 = scmp.eq.s32.totalorder %s31, 1
      %p302 = por %p300, %p301
      %p304 = scmp.ne.s32.totalorder %s287, %s303
      %p305 = scmp.eq.s32.totalorder %s31, 0
      %p306 = por %p304, %p305
      %s307 = ssub.s32 %s32, %s44
      %s308 = ssub.s32 %s33, %s40
      %s309 = sor.u32 %s307, %s308
      %p310 = scmp.eq.s32.totalorder %s309, 0
      %s312 = sadd.s32 %s311, 1
      %s313 = scalar_select %p310, %s311, %s312
      %p316 = pneg %p310
      %p317 = scmp.eq.s32.totalorder %s25, 1
      %p318 = por %p316, %p317
      %p319 = scmp.ne.s32.totalorder %s311, %s314
      %p320 = scmp.eq.s32.totalorder %s25, 0
      %p321 = por %p319, %p320
      %p322 = scmp.ne.s32.totalorder %s311, %s314
      %p323 = scmp.eq.s32.totalorder %s30, 1
      %p324 = por %p322, %p323
      %p325 = scmp.ne.s32.totalorder %s314, %s315
      %p326 = scmp.eq.s32.totalorder %s30, 0
      %p327 = por %p325, %p326
      %p328 = scmp.ne.s32.totalorder %s314, %s315
      %p329 = scmp.eq.s32.totalorder %s31, 1
      %p330 = por %p328, %p329
      %p332 = scmp.ne.s32.totalorder %s315, %s331
      %p333 = scmp.eq.s32.totalorder %s31, 0
      %p334 = por %p332, %p333
      %p335 = scmp.le.s32.totalorder 1, %s25
      %p336 = scmp.lt.s32.totalorder %s25, 3
      %p337 = pnand %p335, %p336
      %p338 = pneg %p337
      // Predicated region
      $region9: #{multi_head_attention.1} parent=5 // pred_check
        _
      $region10: #{multi_head_attention.1} parent=5 // pred_check_branch
        %340 = sbr.rel (%p337) target = $region12
      $region11: #{multi_head_attention.1} parent=5 // pred_region
        %s341 = ssub.s32 %s25, 1
        // Predicated region
        $region13: #{multi_head_attention.1} parent=11 // pred_check
          %p342 = pneg %p138
        $region14: #{multi_head_attention.1} parent=11 // pred_check_branch
          %344 = sbr.rel (%p342) target = $region16
        $region15: #{multi_head_attention.1} parent=11 // pred_region
          _
        $region16: #{multi_head_attention.1} parent=11 // pred_fallthru
          _
        // Predicated region
        $region17: #{multi_head_attention.1} parent=11 // pred_check
          %p345 = pneg %p159
        $region18: #{multi_head_attention.1} parent=11 // pred_check_branch
          %347 = sbr.rel (%p345) target = $region20
        $region19: #{multi_head_attention.1} parent=11 // pred_region
          _
        $region20: #{multi_head_attention.1} parent=11 // pred_fallthru
          _
        // Predicated region
        $region21: #{multi_head_attention.1} parent=11 // pred_check
          %p348 = pneg %p180
        $region22: #{multi_head_attention.1} parent=11 // pred_check_branch
          %350 = sbr.rel (%p348) target = $region24
        $region23: #{multi_head_attention.1} parent=11 // pred_region
          _
        $region24: #{multi_head_attention.1} parent=11 // pred_fallthru
          _
        // Predicated region
        $region25: #{multi_head_attention.1} parent=11 // pred_check
          %p351 = pneg %p201
        $region26: #{multi_head_attention.1} parent=11 // pred_check_branch
          %353 = sbr.rel (%p351) target = $region28
        $region27: #{multi_head_attention.1} parent=11 // pred_region
          _
        $region28: #{multi_head_attention.1} parent=11 // pred_fallthru
          _
        // Predicated region
        $region29: #{multi_head_attention.1} parent=11 // pred_check
          %p354 = pneg %p222
        $region30: #{multi_head_attention.1} parent=11 // pred_check_branch
          %356 = sbr.rel (%p354) target = $region32
        $region31: #{multi_head_attention.1} parent=11 // pred_region
          %s358 = ssub.s32 128, 128
          %359 = vsyncadd [#allocation3], %s358
          %s360 = sshll.u32 [#allocation2], 4
          %s361 = int_to_ptr.vmem [resolvable:$true] %s360
          %366 = dma.hbm_to_vmem [thread:$0]  %s7, 128, %s361, [#allocation3], 64, 64, 4
        $region32: #{multi_head_attention.1} parent=11 // pred_fallthru
          _
        // Predicated region
        $region33: #{multi_head_attention.1} parent=11 // pred_check
          %p367 = pneg %p243
        $region34: #{multi_head_attention.1} parent=11 // pred_check_branch
          %369 = sbr.rel (%p367) target = $region36
        $region35: #{multi_head_attention.1} parent=11 // pred_region
          _
        $region36: #{multi_head_attention.1} parent=11 // pred_fallthru
          _
      $region12: #{multi_head_attention.1} parent=5 // pred_fallthru
        _
      %p370 = scmp.lt.s32.totalorder %s25, 2
      // Predicated region
      $region37: #{multi_head_attention.1} parent=5 // pred_check
        %p371 = pneg %p370
      $region38: #{multi_head_attention.1} parent=5 // pred_check_branch
        %373 = sbr.rel (%p371) target = $region40
      $region39: #{multi_head_attention.1} parent=5 // pred_region
        // Predicated region
        $region41: #{multi_head_attention.1} parent=39 // pred_check
          %p374 = pneg %p59
        $region42: #{multi_head_attention.1} parent=39 // pred_check_branch
          %376 = sbr.rel (%p374) target = $region44
        $region43: #{multi_head_attention.1} parent=39 // pred_region
          %p377 = scmp.lt.s32.totalorder %s32, 1
          %s378 = scalar_select %p377, %s32, 1
          %p379 = scmp.lt.s32.totalorder %s33, 0
          %s380 = scalar_select %p379, %s33, 0
          %s381 = sadd.s32 %s380, %s378
          %s382 = smul.addr %s381, 8
          %s383 = scalar_lea.vmem %s0, %s382
        $region44: #{multi_head_attention.1} parent=39 // pred_fallthru
          _
        // Predicated region
        $region45: #{multi_head_attention.1} parent=39 // pred_check
          %p384 = pneg %p85
        $region46: #{multi_head_attention.1} parent=39 // pred_check_branch
          %386 = sbr.rel (%p384) target = $region48
        $region47: #{multi_head_attention.1} parent=39 // pred_region
          %p387 = scmp.lt.s32.totalorder %s32, 1
          %s388 = scalar_select %p387, %s32, 1
          %s389 = smul.addr %s388, 8
          %s390 = scalar_lea.vmem %s1, %s389
        $region48: #{multi_head_attention.1} parent=39 // pred_fallthru
          _
        // Predicated region
        $region49: #{multi_head_attention.1} parent=39 // pred_check
          %p391 = pneg %p111
        $region50: #{multi_head_attention.1} parent=39 // pred_check_branch
          %393 = sbr.rel (%p391) target = $region52
        $region51: #{multi_head_attention.1} parent=39 // pred_region
          %p394 = scmp.lt.s32.totalorder %s32, 1
          %s395 = scalar_select %p394, %s32, 1
          %s396 = smul.addr %s395, 8
          %s397 = scalar_lea.vmem %s2, %s396
        $region52: #{multi_head_attention.1} parent=39 // pred_fallthru
          _
      $region40: #{multi_head_attention.1} parent=5 // pred_fallthru
        _
      %p398 = scmp.le.s32.totalorder 1, %s25
      %p399 = scmp.lt.s32.totalorder %s25, 3
      %p400 = pnand %p398, %p399
      %p401 = pneg %p400
      // Predicated region
      $region53: #{multi_head_attention.1} parent=5 // pred_check
        _
      $region54: #{multi_head_attention.1} parent=5 // pred_check_branch
        %403 = sbr.rel (%p400) target = $region56
      $region55: #{multi_head_attention.1} parent=5 // pred_region
        %s404 = ssub.s32 %s25, 1
        // Predicated region
        $region57: #{multi_head_attention.1} parent=55 // pred_check
          %p405 = pneg %p222
        $region58: #{multi_head_attention.1} parent=55 // pred_check_branch
          %407 = sbr.rel (%p405) target = $region60
        $region59: #{multi_head_attention.1} parent=55 // pred_region
          %408 = dma.done [#allocation3], 128
        $region60: #{multi_head_attention.1} parent=55 // pred_fallthru
          _
        %p409 = scmp.lt.s32.totalorder %s34, 1
        %s410 = scalar_select %p409, %s34, 1
        %p411 = scmp.lt.s32.totalorder %s35, 0
        %s412 = scalar_select %p411, %s35, 0
        %s413 = sadd.s32 %s412, %s410
        %s414 = smul.addr %s413, 8
        %s415 = scalar_lea.vmem %s0, %s414
        %p416 = pneg %p65
        %p417 = pneg %p62
        %p418 = scmp.lt.s32.totalorder %s34, 1
        %s419 = scalar_select %p418, %s34, 1
        %s420 = smul.addr %s419, 8
        %s421 = scalar_lea.vmem %s1, %s420
        %p422 = pneg %p91
        %p423 = pneg %p88
        %p424 = scmp.lt.s32.totalorder %s34, 1
        %s425 = scalar_select %p424, %s34, 1
        %s426 = smul.addr %s425, 8
        %s427 = scalar_lea.vmem %s2, %s426
        %p428 = pneg %p117
        %p429 = pneg %p114
        %p430 = pneg %p138
        %p431 = pneg %p135
        %p432 = pneg %p159
        %p433 = pneg %p156
        %p434 = pneg %p180
        %p435 = pneg %p177
        %p436 = pneg %p201
        %p437 = pneg %p198
        %p438 = pneg %p222
        %p439 = pneg %p219
        %p440 = pneg %p243
        %p441 = pneg %p240
        %p442 = pneg %p271
        %p443 = pneg %p268
        %s444 = sand.u32 %s258, 1
        %s445 = scalar_lea.sflag [#allocation4], %s444
        %s446 = sand.u32 %s258, 1
        %s447 = smul.addr %s446, 8
        %s448 = scalar_lea.vmem [#allocation5], %s447
        %p449 = pneg %p299
        %p450 = pneg %p296
        %s451 = sand.u32 %s30, 1
        %s452 = scalar_lea.sflag [#allocation7], %s451
        %s453 = sand.u32 %s286, 1
        %s454 = smul.addr %s453, 8
        %s455 = scalar_lea.vmem [#allocation6], %s454
        %p456 = pneg %p327
        %p457 = pneg %p324
        %s458 = sand.u32 %s30, 1
        %s459 = scalar_lea.sflag [#allocation7], %s458
        %s460 = sand.u32 %s314, 1
        %s461 = smul.addr %s460, 8
        %s462 = scalar_lea.vmem [#allocation8], %s461
        %p463 = scmp.lt.s32.totalorder %s34, 1
        %s464 = scalar_select %p463, %s34, 1
        %p465 = scmp.lt.s32.totalorder %s35, 0
        %s466 = scalar_select %p465, %s35, 0
        %s467 = sadd.s32 %s466, %s464
        %s468 = smul.addr %s467, 8
        %s469 = scalar_lea.vmem %s0, %s468
        %p470 = scmp.lt.s32.totalorder %s34, 1
        %s471 = scalar_select %p470, %s34, 1
        %s472 = smul.addr %s471, 8
        %s473 = scalar_lea.vmem %s1, %s472
        %p474 = scmp.lt.s32.totalorder %s34, 1
        %s475 = scalar_select %p474, %s34, 1
        %s476 = smul.addr %s475, 8
        %s477 = scalar_lea.vmem %s2, %s476
        %v479 = vld [vmem:[%s8] sm:$0xff]
        %v480 = vld [vmem:[%s8 + $0x8] sm:$0x7]
        %v481 = vld [vmem:[%s469] sm:$0xff]
        %v482 = vpack.c.bf16 %v481, %v481
        %v483 = vld [vmem:[%s473] sm:$0xff]
        %v484 = vpack.c.bf16 %v483, %v483
        %v485 = vld [vmem:[%s477] sm:$0xff]
        %v486 = vpack.c.bf16 %v485, %v485
        %v487 = vld [vmem:[%s3] sm:$0xf]
        %v488 = vld [vmem:[%s3 + $0x4] sm:$0xf]
        %v489 = vld [vmem:[%s3 + $0x8] sm:$0xf]
        %v490 = vld [vmem:[%s3 + $0xc] sm:$0xf]
        %v491 = vlaneseq
        %v492 = vshrl.u32 %v491, 7
        %v493 = vsub.s32 0, %v492
        %v494 = vrot.slane %v479, %v493
        %v499 = vunpack.c.l.b16 %v487
        %v500 = vunpack.c.l.b16 %v488
        %v501 = vunpack.c.l.b16 %v489
        %v502 = vunpack.c.l.b16 %v490
        %v503 = vpack.c.b16 %v500, %v499
        %v504 = vpack.c.b16 %v502, %v501
        %vm507 = vcmask 261120
        %v509 = vsel %vm507, %v482, 0
        %511 = vmatprep.subr.bf16.mxu0 0
        %512 = vmatpush1.bf16.msra.mxu0 0
        %513 = vmatprep.subr.bf16.mxu0 0
        %514 = vmatpush1.bf16.msra.mxu0 0
        %515 = vmatprep.subr.bf16.mxu0 0
        %516 = vmatpush1.bf16.msra.mxu0 0
        %517 = vmatprep.subr.bf16.mxu0 0
        %518 = vmatpush1.bf16.msra.mxu0 0
        %519 = vmatprep.subr.bf16.mxu0 0
        %520 = vmatpush1.bf16.msra.mxu0 0
        %521 = vmatprep.subr.bf16.mxu0 0
        %522 = vmatpush1.bf16.msra.mxu0 0
        %523 = vmatprep.subr.bf16.mxu0 0
        %524 = vmatpush1.bf16.msra.mxu0 %v504
        %525 = vmatprep.subr.bf16.mxu0 0
        %526 = vmatpush1.bf16.msra.mxu0 %v503
        %527 = vmatprep.subr.bf16.mxu0 0
        %528 = vmatpush2.bf16.msra.mxu0 0
        %529 = vmatprep.subr.bf16.mxu0 0
        %530 = vmatpush2.bf16.msra.mxu0 0
        %531 = vmatprep.subr.bf16.mxu0 0
        %532 = vmatpush2.bf16.msra.mxu0 0
        %533 = vmatprep.subr.bf16.mxu0 0
        %534 = vmatpush2.bf16.msra.mxu0 0
        %535 = vmatprep.subr.bf16.mxu0 0
        %536 = vmatpush2.bf16.msra.mxu0 0
        %537 = vmatprep.subr.bf16.mxu0 0
        %538 = vmatpush2.bf16.msra.mxu0 0
        %539 = vmatprep.subr.bf16.mxu0 0
        %540 = vmatpush2.bf16.msra.mxu0 0
        %541 = vmatprep.subr.bf16.mxu0 0
        %542 = vmatpush2.bf16.msra.mxu0 0
        %543 = vmatprep.mubr.bf16.mxu0 0
        %544 = vmatmul.mubr.bf16.gmra.mxu0 %v509
        %v545 = vpop.f32.mrf.mxu0
        %v546 = vadd.f32 %v494, %v545
        %v547 = vpop.f32.mrf.mxu0
        %v548 = vpop.f32.mrf.mxu0
        %v549 = vpop.f32.mrf.mxu0
        %550 = vdwg.mxu0
        %v551 = vld [vmem:[%s4] sm:$0xf]
        %v552 = vld [vmem:[%s4 + $0x4] sm:$0xf]
        %v553 = vld [vmem:[%s4 + $0x8] sm:$0xf]
        %v554 = vld [vmem:[%s4 + $0xc] sm:$0xf]
        %v555 = vlaneseq
        %v556 = vshrl.u32 %v555, 7
        %v557 = vsub.s32 1, %v556
        %v558 = vrot.slane %v479, %v557
        %v563 = vunpack.c.l.b16 %v551
        %v564 = vunpack.c.l.b16 %v552
        %v565 = vunpack.c.l.b16 %v553
        %v566 = vunpack.c.l.b16 %v554
        %v567 = vpack.c.b16 %v564, %v563
        %v568 = vpack.c.b16 %v566, %v565
        %v572 = vsel %vm507, %v484, 0
        %574 = vmatprep.subr.bf16.mxu0 0
        %575 = vmatpush1.bf16.msra.mxu0 0
        %576 = vmatprep.subr.bf16.mxu0 0
        %577 = vmatpush1.bf16.msra.mxu0 0
        %578 = vmatprep.subr.bf16.mxu0 0
        %579 = vmatpush1.bf16.msra.mxu0 0
        %580 = vmatprep.subr.bf16.mxu0 0
        %581 = vmatpush1.bf16.msra.mxu0 0
        %582 = vmatprep.subr.bf16.mxu0 0
        %583 = vmatpush1.bf16.msra.mxu0 0
        %584 = vmatprep.subr.bf16.mxu0 0
        %585 = vmatpush1.bf16.msra.mxu0 0
        %586 = vmatprep.subr.bf16.mxu0 0
        %587 = vmatpush1.bf16.msra.mxu0 %v568
        %588 = vmatprep.subr.bf16.mxu0 0
        %589 = vmatpush1.bf16.msra.mxu0 %v567
        %590 = vmatprep.subr.bf16.mxu0 0
        %591 = vmatpush2.bf16.msra.mxu0 0
        %592 = vmatprep.subr.bf16.mxu0 0
        %593 = vmatpush2.bf16.msra.mxu0 0
        %594 = vmatprep.subr.bf16.mxu0 0
        %595 = vmatpush2.bf16.msra.mxu0 0
        %596 = vmatprep.subr.bf16.mxu0 0
        %597 = vmatpush2.bf16.msra.mxu0 0
        %598 = vmatprep.subr.bf16.mxu0 0
        %599 = vmatpush2.bf16.msra.mxu0 0
        %600 = vmatprep.subr.bf16.mxu0 0
        %601 = vmatpush2.bf16.msra.mxu0 0
        %602 = vmatprep.subr.bf16.mxu0 0
        %603 = vmatpush2.bf16.msra.mxu0 0
        %604 = vmatprep.subr.bf16.mxu0 0
        %605 = vmatpush2.bf16.msra.mxu0 0
        %606 = vmatprep.mubr.bf16.mxu0 0
        %607 = vmatmul.mubr.bf16.gmra.mxu0 %v572
        %v608 = vpop.f32.mrf.mxu0
        %v609 = vadd.f32 %v558, %v608
        %v610 = vpop.f32.mrf.mxu0
        %v611 = vpop.f32.mrf.mxu0
        %v612 = vpop.f32.mrf.mxu0
        %613 = vdwg.mxu0
        %v614 = vld [vmem:[%s5] sm:$0xf]
        %v615 = vld [vmem:[%s5 + $0x4] sm:$0xf]
        %v616 = vld [vmem:[%s5 + $0x8] sm:$0xf]
        %v617 = vld [vmem:[%s5 + $0xc] sm:$0xf]
        %v618 = vlaneseq
        %v619 = vshrl.u32 %v618, 7
        %v620 = vsub.s32 2, %v619
        %v621 = vrot.slane %v479, %v620
        %v626 = vunpack.c.l.b16 %v614
        %v627 = vunpack.c.l.b16 %v615
        %v628 = vunpack.c.l.b16 %v616
        %v629 = vunpack.c.l.b16 %v617
        %v630 = vpack.c.b16 %v627, %v626
        %v631 = vpack.c.b16 %v629, %v628
        %v635 = vsel %vm507, %v486, 0
        %637 = vmatprep.subr.bf16.mxu0 0
        %638 = vmatpush1.bf16.msra.mxu0 0
        %639 = vmatprep.subr.bf16.mxu0 0
        %640 = vmatpush1.bf16.msra.mxu0 0
        %641 = vmatprep.subr.bf16.mxu0 0
        %642 = vmatpush1.bf16.msra.mxu0 0
        %643 = vmatprep.subr.bf16.mxu0 0
        %644 = vmatpush1.bf16.msra.mxu0 0
        %645 = vmatprep.subr.bf16.mxu0 0
        %646 = vmatpush1.bf16.msra.mxu0 0
        %647 = vmatprep.subr.bf16.mxu0 0
        %648 = vmatpush1.bf16.msra.mxu0 0
        %649 = vmatprep.subr.bf16.mxu0 0
        %650 = vmatpush1.bf16.msra.mxu0 %v631
        %651 = vmatprep.subr.bf16.mxu0 0
        %652 = vmatpush1.bf16.msra.mxu0 %v630
        %653 = vmatprep.subr.bf16.mxu0 0
        %654 = vmatpush2.bf16.msra.mxu0 0
        %655 = vmatprep.subr.bf16.mxu0 0
        %656 = vmatpush2.bf16.msra.mxu0 0
        %657 = vmatprep.subr.bf16.mxu0 0
        %658 = vmatpush2.bf16.msra.mxu0 0
        %659 = vmatprep.subr.bf16.mxu0 0
        %660 = vmatpush2.bf16.msra.mxu0 0
        %661 = vmatprep.subr.bf16.mxu0 0
        %662 = vmatpush2.bf16.msra.mxu0 0
        %663 = vmatprep.subr.bf16.mxu0 0
        %664 = vmatpush2.bf16.msra.mxu0 0
        %665 = vmatprep.subr.bf16.mxu0 0
        %666 = vmatpush2.bf16.msra.mxu0 0
        %667 = vmatprep.subr.bf16.mxu0 0
        %668 = vmatpush2.bf16.msra.mxu0 0
        %669 = vmatprep.mubr.bf16.mxu0 0
        %670 = vmatmul.mubr.bf16.gmra.mxu0 %v635
        %v671 = vpop.f32.mrf.mxu0
        %v672 = vadd.f32 %v621, %v671
        %v673 = vpop.f32.mrf.mxu0
        %v674 = vpop.f32.mrf.mxu0
        %v675 = vpop.f32.mrf.mxu0
        %676 = vdwg.mxu0
        %vm677 = vcmask 130048
        %678 = vst.msk [vmem:[%s455] sm:$0xff] %vm677, %v546
        %v679 = vsel %vm677, %v546, 0.0
        %680 = vadd.xlane.f32.xlu0 %v679
        %v681 = vpop.xlane.xlu0 %680
        %v682 = vrcp.pop 16.0
        %v683 = vmul.f32 %v681, %v682
        %v684 = vsub.f32 %v546, %v683
        %v685 = vmul.f32 %v684, %v684
        %v686 = vsel %vm677, %v685, 0.0
        %687 = vadd.xlane.f32.xlu0 %v686
        %v688 = vpop.xlane.xlu0 %687
        %v689 = vmul.f32 %v688, %v682
        %v690 = vadd.f32 %v689, 1e-06
        %v691 = vrsqrt.pop %v690
        %v692 = vmul.f32 %v684, %v691
        %v693 = vlaneseq
        %v694 = vshrl.u32 %v693, 7
        %v695 = vsub.s32 3, %v694
        %v696 = vrot.slane %v479, %v695
        %v697 = vmul.f32 %v692, %v696
        %v698 = vlaneseq
        %v699 = vshrl.u32 %v698, 7
        %v700 = vsub.s32 4, %v699
        %v701 = vrot.slane %v479, %v700
        %v702 = vadd.f32 %v697, %v701
        %v703 = vsel %vm677, %v609, 0.0
        %704 = vadd.xlane.f32.xlu0 %v703
        %v705 = vpop.xlane.xlu0 %704
        %v706 = vmul.f32 %v705, %v682
        %v707 = vsub.f32 %v609, %v706
        %v708 = vmul.f32 %v707, %v707
        %v709 = vsel %vm677, %v708, 0.0
        %710 = vadd.xlane.f32.xlu0 %v709
        %v711 = vpop.xlane.xlu0 %710
        %v712 = vmul.f32 %v711, %v682
        %v713 = vadd.f32 %v712, 1e-06
        %v714 = vrsqrt.pop %v713
        %v715 = vmul.f32 %v707, %v714
        %v716 = vlaneseq
        %v717 = vshrl.u32 %v716, 7
        %v718 = vsub.s32 5, %v717
        %v719 = vrot.slane %v479, %v718
        %v720 = vmul.f32 %v715, %v719
        %v721 = vlaneseq
        %v722 = vshrl.u32 %v721, 7
        %v723 = vsub.s32 6, %v722
        %v724 = vrot.slane %v479, %v723
        %v725 = vadd.f32 %v720, %v724
        %v726 = vsel %vm677, %v672, 0.0
        %727 = vadd.xlane.f32.xlu0 %v726
        %v728 = vpop.xlane.xlu0 %727
        %v729 = vmul.f32 %v728, %v682
        %v730 = vsub.f32 %v672, %v729
        %v731 = vmul.f32 %v730, %v730
        %v732 = vsel %vm677, %v731, 0.0
        %733 = vadd.xlane.f32.xlu0 %v732
        %v734 = vpop.xlane.xlu0 %733
        %v735 = vmul.f32 %v734, %v682
        %v736 = vadd.f32 %v735, 1e-06
        %v737 = vrsqrt.pop %v736
        %v738 = vmul.f32 %v730, %v737
        %v739 = vlaneseq
        %v740 = vshrl.u32 %v739, 7
        %v741 = vsub.s32 7, %v740
        %v742 = vrot.slane %v479, %v741
        %v743 = vmul.f32 %v738, %v742
        %v744 = vlaneseq
        %v745 = vshrl.u32 %v744, 7
        %v746 = vsub.s32 0, %v745
        %v747 = vrot.slane %v480, %v746
        %v748 = vadd.f32 %v743, %v747
        %v749 = vmul.f32 %v702, 0.25
        %v750 = vpack.c.bf16 %v749, %v749
        %v751 = vpack.c.bf16 %v725, %v725
        %v752 = vpack.c.bf16 %v748, %v748
        %v754 = vsel %vm677, %v750, 0
        %v757 = vsel %vm677, %v751, 0
        %759 = vmatprep.subr.bf16.mxu0 0
        %760 = vmatpush1.bf16.xpose.msra.mxu0 0
        %761 = vmatprep.subr.bf16.mxu0 0
        %762 = vmatpush1.bf16.xpose.msra.mxu0 0
        %763 = vmatprep.subr.bf16.mxu0 0
        %764 = vmatpush1.bf16.xpose.msra.mxu0 0
        %765 = vmatprep.subr.bf16.mxu0 0
        %766 = vmatpush1.bf16.xpose.msra.mxu0 0
        %767 = vmatprep.subr.bf16.mxu0 0
        %768 = vmatpush1.bf16.xpose.msra.mxu0 0
        %769 = vmatprep.subr.bf16.mxu0 0
        %770 = vmatpush1.bf16.xpose.msra.mxu0 0
        %771 = vmatprep.subr.bf16.mxu0 0
        %772 = vmatpush1.bf16.xpose.msra.mxu0 0
        %773 = vmatprep.subr.bf16.mxu0 0
        %774 = vmatpush1.bf16.xpose.msra.mxu0 %v757
        %775 = vmatprep.subr.bf16.mxu0 0
        %776 = vmatpush2.bf16.xpose.msra.mxu0 0
        %777 = vmatprep.subr.bf16.mxu0 0
        %778 = vmatpush2.bf16.xpose.msra.mxu0 0
        %779 = vmatprep.subr.bf16.mxu0 0
        %780 = vmatpush2.bf16.xpose.msra.mxu0 0
        %781 = vmatprep.subr.bf16.mxu0 0
        %782 = vmatpush2.bf16.xpose.msra.mxu0 0
        %783 = vmatprep.subr.bf16.mxu0 0
        %784 = vmatpush2.bf16.xpose.msra.mxu0 0
        %785 = vmatprep.subr.bf16.mxu0 0
        %786 = vmatpush2.bf16.xpose.msra.mxu0 0
        %787 = vmatprep.subr.bf16.mxu0 0
        %788 = vmatpush2.bf16.xpose.msra.mxu0 0
        %789 = vmatprep.subr.bf16.mxu0 0
        %790 = vmatpush2.bf16.xpose.msra.mxu0 0
        %791 = vmatprep.mubr.bf16.mxu0 0
        %792 = vmatmul.mubr.bf16.gmra.mxu0 %v754
        %v793 = vpop.f32.mrf.mxu0
        %v794 = vadd.f32 0.0, %v793
        %v795 = vpop.f32.mrf.mxu0
        %v796 = vpop.f32.mrf.mxu0
        %v797 = vpop.f32.mrf.mxu0
        %798 = vdwg.mxu0
        %vm799 = vcmask 64512
        %v800 = vsel %vm799, %v794, -inf
        %801 = vmax.xlane.f32.xlu0 %v800
        %v802 = vpop.xlane.xlu0 %801
        %v803 = vsub.f32 %v794, %v802
        %v804 = vmul.f32 %v803, 1.442695
        %v805 = vpow.pop %v804
        %v806 = vsel %vm799, %v805, 0.0
        %807 = vadd.xlane.f32.xlu0 %v806
        %v808 = vpop.xlane.xlu0 %807
        %v809 = vrcp.pop %v808
        %v810 = vmul.f32 %v805, %v809
        %811 = vst.msk [vmem:[%s462] sm:$0xff] %vm799, %v810
        %v812 = vpack.c.bf16 %v810, %v810
        %v814 = vsel %vm799, %v812, 0
        %vm816 = vcmask 1043456
        %v818 = vsel %vm816, %v752, 0
        %820 = vmatprep.subr.bf16.mxu0 0
        %821 = vmatpush1.bf16.msra.mxu0 0
        %822 = vmatprep.subr.bf16.mxu0 0
        %823 = vmatpush1.bf16.msra.mxu0 0
        %824 = vmatprep.subr.bf16.mxu0 0
        %825 = vmatpush1.bf16.msra.mxu0 0
        %826 = vmatprep.subr.bf16.mxu0 0
        %827 = vmatpush1.bf16.msra.mxu0 0
        %828 = vmatprep.subr.bf16.mxu0 0
        %829 = vmatpush1.bf16.msra.mxu0 0
        %830 = vmatprep.subr.bf16.mxu0 0
        %831 = vmatpush1.bf16.msra.mxu0 0
        %832 = vmatprep.subr.bf16.mxu0 0
        %833 = vmatpush1.bf16.msra.mxu0 0
        %834 = vmatprep.subr.bf16.mxu0 0
        %835 = vmatpush1.bf16.msra.mxu0 %v818
        %836 = vmatprep.subr.bf16.mxu0 0
        %837 = vmatpush2.bf16.msra.mxu0 0
        %838 = vmatprep.subr.bf16.mxu0 0
        %839 = vmatpush2.bf16.msra.mxu0 0
        %840 = vmatprep.subr.bf16.mxu0 0
        %841 = vmatpush2.bf16.msra.mxu0 0
        %842 = vmatprep.subr.bf16.mxu0 0
        %843 = vmatpush2.bf16.msra.mxu0 0
        %844 = vmatprep.subr.bf16.mxu0 0
        %845 = vmatpush2.bf16.msra.mxu0 0
        %846 = vmatprep.subr.bf16.mxu0 0
        %847 = vmatpush2.bf16.msra.mxu0 0
        %848 = vmatprep.subr.bf16.mxu0 0
        %849 = vmatpush2.bf16.msra.mxu0 0
        %850 = vmatprep.subr.bf16.mxu0 0
        %851 = vmatpush2.bf16.msra.mxu0 0
        %852 = vmatprep.mubr.bf16.mxu0 0
        %853 = vmatmul.mubr.bf16.gmra.mxu0 %v814
        %v854 = vpop.f32.mrf.mxu0
        %v855 = vadd.f32 0.0, %v854
        %v856 = vpop.f32.mrf.mxu0
        %v857 = vpop.f32.mrf.mxu0
        %v858 = vpop.f32.mrf.mxu0
        %859 = vdwg.mxu0
        %v860 = vpack.c.bf16 %v855, %v855
        %v861 = vld [vmem:[%s6] sm:$0xf]
        %v862 = vld [vmem:[%s6 + $0x4] sm:$0xf]
        %v863 = vlaneseq
        %v864 = vshrl.u32 %v863, 7
        %v865 = vsub.s32 1, %v864
        %v866 = vrot.slane %v480, %v865
        %v869 = vunpack.c.l.b16 %v861
        %v870 = vunpack.c.l.b16 %v862
        %v871 = vpack.c.b16 %v870, %v869
        %v874 = vsel %vm677, %v860, 0
        %876 = vmatprep.subr.bf16.mxu0 0
        %877 = vmatpush1.bf16.msra.mxu0 0
        %878 = vmatprep.subr.bf16.mxu0 0
        %879 = vmatpush1.bf16.msra.mxu0 0
        %880 = vmatprep.subr.bf16.mxu0 0
        %881 = vmatpush1.bf16.msra.mxu0 0
        %882 = vmatprep.subr.bf16.mxu0 0
        %883 = vmatpush1.bf16.msra.mxu0 0
        %884 = vmatprep.subr.bf16.mxu0 0
        %885 = vmatpush1.bf16.msra.mxu0 0
        %886 = vmatprep.subr.bf16.mxu0 0
        %887 = vmatpush1.bf16.msra.mxu0 0
        %888 = vmatprep.subr.bf16.mxu0 0
        %889 = vmatpush1.bf16.msra.mxu0 0
        %890 = vmatprep.subr.bf16.mxu0 0
        %891 = vmatpush1.bf16.msra.mxu0 %v871
        %892 = vmatprep.subr.bf16.mxu0 0
        %893 = vmatpush2.bf16.msra.mxu0 0
        %894 = vmatprep.subr.bf16.mxu0 0
        %895 = vmatpush2.bf16.msra.mxu0 0
        %896 = vmatprep.subr.bf16.mxu0 0
        %897 = vmatpush2.bf16.msra.mxu0 0
        %898 = vmatprep.subr.bf16.mxu0 0
        %899 = vmatpush2.bf16.msra.mxu0 0
        %900 = vmatprep.subr.bf16.mxu0 0
        %901 = vmatpush2.bf16.msra.mxu0 0
        %902 = vmatprep.subr.bf16.mxu0 0
        %903 = vmatpush2.bf16.msra.mxu0 0
        %904 = vmatprep.subr.bf16.mxu0 0
        %905 = vmatpush2.bf16.msra.mxu0 0
        %906 = vmatprep.subr.bf16.mxu0 0
        %907 = vmatpush2.bf16.msra.mxu0 0
        %908 = vmatprep.mubr.bf16.mxu0 0
        %909 = vmatmul.mubr.bf16.gmra.mxu0 %v874
        %v910 = vpop.f32.mrf.mxu0
        %v911 = vadd.f32 %v866, %v910
        %v912 = vpop.f32.mrf.mxu0
        %v913 = vpop.f32.mrf.mxu0
        %v914 = vpop.f32.mrf.mxu0
        %915 = vdwg.mxu0
        %v916 = vmax.f32 %v911, 0.0
        %v917 = vpack.c.bf16 %v916, %v916
        %v918 = vld [vmem:[#allocation2] sm:$0xf]
        %v919 = vld [vmem:[#allocation2 + $0x4] sm:$0xf]
        %v920 = vlaneseq
        %v921 = vshrl.u32 %v920, 7
        %v922 = vsub.s32 2, %v921
        %v923 = vrot.slane %v480, %v922
        %v926 = vunpack.c.l.b16 %v918
        %v927 = vunpack.c.l.b16 %v919
        %v928 = vpack.c.b16 %v927, %v926
        %v931 = vsel %vm677, %v917, 0
        %933 = vmatprep.subr.bf16.mxu0 0
        %934 = vmatpush1.bf16.msra.mxu0 0
        %935 = vmatprep.subr.bf16.mxu0 0
        %936 = vmatpush1.bf16.msra.mxu0 0
        %937 = vmatprep.subr.bf16.mxu0 0
        %938 = vmatpush1.bf16.msra.mxu0 0
        %939 = vmatprep.subr.bf16.mxu0 0
        %940 = vmatpush1.bf16.msra.mxu0 0
        %941 = vmatprep.subr.bf16.mxu0 0
        %942 = vmatpush1.bf16.msra.mxu0 0
        %943 = vmatprep.subr.bf16.mxu0 0
        %944 = vmatpush1.bf16.msra.mxu0 0
        %945 = vmatprep.subr.bf16.mxu0 0
        %946 = vmatpush1.bf16.msra.mxu0 0
        %947 = vmatprep.subr.bf16.mxu0 0
        %948 = vmatpush1.bf16.msra.mxu0 %v928
        %949 = vmatprep.subr.bf16.mxu0 0
        %950 = vmatpush2.bf16.msra.mxu0 0
        %951 = vmatprep.subr.bf16.mxu0 0
        %952 = vmatpush2.bf16.msra.mxu0 0
        %953 = vmatprep.subr.bf16.mxu0 0
        %954 = vmatpush2.bf16.msra.mxu0 0
        %955 = vmatprep.subr.bf16.mxu0 0
        %956 = vmatpush2.bf16.msra.mxu0 0
        %957 = vmatprep.subr.bf16.mxu0 0
        %958 = vmatpush2.bf16.msra.mxu0 0
        %959 = vmatprep.subr.bf16.mxu0 0
        %960 = vmatpush2.bf16.msra.mxu0 0
        %961 = vmatprep.subr.bf16.mxu0 0
        %962 = vmatpush2.bf16.msra.mxu0 0
        %963 = vmatprep.subr.bf16.mxu0 0
        %964 = vmatpush2.bf16.msra.mxu0 0
        %965 = vmatprep.mubr.bf16.mxu0 0
        %966 = vmatmul.mubr.bf16.gmra.mxu0 %v931
        %v967 = vpop.f32.mrf.mxu0
        %v968 = vadd.f32 %v923, %v967
        %v969 = vpop.f32.mrf.mxu0
        %v970 = vpop.f32.mrf.mxu0
        %v971 = vpop.f32.mrf.mxu0
        %972 = vdwg.mxu0
        %973 = vst.msk [vmem:[%s448] sm:$0xff] %vm507, %v968
        %s974 = sand.u32 %s258, 1
        %s975 = scalar_lea.sflag [#allocation4], %s974
        %s976 = sand.u32 %s258, 1
        %s977 = smul.addr %s976, 8
        %s978 = scalar_lea.vmem [#allocation5], %s977
        %s979 = sand.u32 %s30, 1
        %s980 = scalar_lea.sflag [#allocation7], %s979
        %s981 = sand.u32 %s286, 1
        %s982 = smul.addr %s981, 8
        %s983 = scalar_lea.vmem [#allocation6], %s982
        %s984 = sand.u32 %s30, 1
        %s985 = scalar_lea.sflag [#allocation7], %s984
        %s986 = sand.u32 %s314, 1
        %s987 = smul.addr %s986, 8
        %s988 = scalar_lea.vmem [#allocation8], %s987
        // Predicated region
        $region61: #{multi_head_attention.1} parent=55 // pred_check
          %p989 = pneg %p268
        $region62: #{multi_head_attention.1} parent=55 // pred_check_branch
          %991 = sbr.rel (%p989) target = $region64
        $region63: #{multi_head_attention.1} parent=55 // pred_region
          %s993 = ssub.s32 128, 128
          %994 = vsyncadd %s975, %s993
          %s995 = sadd.s32 %s35, %s34
          %s996 = smul.addr %s995, 128
          %s997 = scalar_lea.hbm %s9, %s996
          %s999 = sshll.u32 %s978, 4
          %s1000 = int_to_ptr.vmem [resolvable:$true] %s999
          %1002 = dma.vmem_to_hbm [thread:$0]  %s1000, 128, %s997, %s975
        $region64: #{multi_head_attention.1} parent=55 // pred_fallthru
          _
        // Predicated region
        $region65: #{multi_head_attention.1} parent=55 // pred_check
          %p1003 = pneg %p296
        $region66: #{multi_head_attention.1} parent=55 // pred_check_branch
          %1005 = sbr.rel (%p1003) target = $region68
        $region67: #{multi_head_attention.1} parent=55 // pred_region
          %s1007 = ssub.s32 128, 128
          %1008 = vsyncadd %s980, %s1007
          %s1009 = sadd.s32 %s35, %s34
          %s1010 = smul.addr %s1009, 128
          %s1011 = scalar_lea.hbm %s10, %s1010
          %s1013 = sshll.u32 %s983, 4
          %s1014 = int_to_ptr.vmem [resolvable:$true] %s1013
          %1016 = dma.vmem_to_hbm [thread:$0]  %s1014, 128, %s1011, %s980
        $region68: #{multi_head_attention.1} parent=55 // pred_fallthru
          _
        // Predicated region
        $region69: #{multi_head_attention.1} parent=55 // pred_check
          %p1017 = pneg %p324
        $region70: #{multi_head_attention.1} parent=55 // pred_check_branch
          %1019 = sbr.rel (%p1017) target = $region72
        $region71: #{multi_head_attention.1} parent=55 // pred_region
          %s1021 = ssub.s32 128, 128
          %1022 = vsyncadd %s985, %s1021
          %s1023 = sadd.s32 %s35, %s34
          %s1024 = smul.addr %s1023, 128
          %s1025 = scalar_lea.hbm %s11, %s1024
          %s1027 = sshll.u32 %s988, 4
          %s1028 = int_to_ptr.vmem [resolvable:$true] %s1027
          %1030 = dma.vmem_to_hbm [thread:$0]  %s1028, 128, %s1025, %s985
        $region72: #{multi_head_attention.1} parent=55 // pred_fallthru
          _
      $region56: #{multi_head_attention.1} parent=5 // pred_fallthru
        _
      %p1031 = scmp.le.s32.totalorder 2, %s25
      // Predicated region
      $region73: #{multi_head_attention.1} parent=5 // pred_check
        %p1032 = pneg %p1031
      $region74: #{multi_head_attention.1} parent=5 // pred_check_branch
        %1034 = sbr.rel (%p1032) target = $region76
      $region75: #{multi_head_attention.1} parent=5 // pred_region
        %s1035 = ssub.s32 %s25, 2
        // Predicated region
        $region77: #{multi_head_attention.1} parent=75 // pred_check
          %p1036 = pneg %p274
        $region78: #{multi_head_attention.1} parent=75 // pred_check_branch
          %1038 = sbr.rel (%p1036) target = $region80
        $region79: #{multi_head_attention.1} parent=75 // pred_region
          %s1039 = sand.u32 %s259, 1
          %s1040 = scalar_lea.sflag [#allocation4], %s1039
          %s1041 = sand.u32 %s259, 1
          %s1042 = smul.addr %s1041, 8
          %s1043 = scalar_lea.vmem [#allocation5], %s1042
          %1044 = dma.done %s1040, 128
        $region80: #{multi_head_attention.1} parent=75 // pred_fallthru
          _
        // Predicated region
        $region81: #{multi_head_attention.1} parent=75 // pred_check
          %p1045 = pneg %p302
        $region82: #{multi_head_attention.1} parent=75 // pred_check_branch
          %1047 = sbr.rel (%p1045) target = $region84
        $region83: #{multi_head_attention.1} parent=75 // pred_region
          %s1048 = sand.u32 %s31, 1
          %s1049 = scalar_lea.sflag [#allocation7], %s1048
          %s1050 = sand.u32 %s287, 1
          %s1051 = smul.addr %s1050, 8
          %s1052 = scalar_lea.vmem [#allocation6], %s1051
          %1053 = dma.done %s1049, 128
        $region84: #{multi_head_attention.1} parent=75 // pred_fallthru
          _
        // Predicated region
        $region85: #{multi_head_attention.1} parent=75 // pred_check
          %p1054 = pneg %p330
        $region86: #{multi_head_attention.1} parent=75 // pred_check_branch
          %1056 = sbr.rel (%p1054) target = $region88
        $region87: #{multi_head_attention.1} parent=75 // pred_region
          %s1057 = sand.u32 %s31, 1
          %s1058 = scalar_lea.sflag [#allocation7], %s1057
          %s1059 = sand.u32 %s315, 1
          %s1060 = smul.addr %s1059, 8
          %s1061 = scalar_lea.vmem [#allocation8], %s1060
          %1062 = dma.done %s1058, 128
        $region88: #{multi_head_attention.1} parent=75 // pred_fallthru
          _
      $region76: #{multi_head_attention.1} parent=5 // pred_fallthru
        _
    $region6: #{multi_head_attention.1} parent=1 // loop_footer
      %s29 = sadd.s32 1, %s25
    $region7: #{multi_head_attention.1} parent=1 // loop_footer_branch
      %24 = sbr.rel target = $region3
    $region8: #{multi_head_attention.1} parent=1 // loop_exit
      _
    %1063 = vsyncpa [#allocation3], 1
    %s1064 = scalar_lea.sflag [#allocation3], 1
    %1065 = vsyncpa %s1064, 1
    %1066 = vsyncpa [#allocation4], 1
    %s1067 = scalar_lea.sflag [#allocation4], 1
    %1068 = vsyncpa %s1067, 1
    %1069 = vsyncpa [#allocation7], 1
    %s1070 = scalar_lea.sflag [#allocation7], 1
    %1071 = vsyncpa %s1070, 1

</llo_original>
